<compile_context>
chip_gen: v7x
topology: tpu7x:2x2x1
jax: 0.10.0
libtpu: 0.0.40
codegen_flags: <defaults>
</compile_context>

<pallas_src>
import functools
import math

import jax
import jax.numpy as jnp
from jax.experimental import pallas as pl
from jax.experimental.pallas import tpu as pltpu

# ---- model hyper-parameters (match the PyTorch module defaults) -------------
IMG = 32
PATCH = 8
IN_CH = 3
EMBED = 64
HEADS = 4
DEPTH = 6
CLASSES = 10
CLASSES_PAD = 128                    # lane-dense head output, sliced to 10 outside
HEAD_DIM = EMBED // HEADS            # 16
NPATCH = (IMG // PATCH) ** 2         # 16
SEQ = NPATCH + 1                     # 17 (patches + cls token)
SEQ_PAD = 24                         # per-image token rows, padded to multiple of 8
FF = EMBED * 4                       # 256
LN_EPS = 1e-5


def _layernorm(y, gamma, beta):
    mu = jnp.mean(y, axis=-1, keepdims=True)
    var = jnp.mean((y - mu) ** 2, axis=-1, keepdims=True)
    return (y - mu) * jax.lax.rsqrt(var + LN_EPS) * gamma + beta


# ---------------------------- fused Pallas kernel -----------------------------

def _vit_fused_kernel(B,
                      patches_ref, patch_w_ref, patch_b_ref,
                      cls_pos_ref, pos_patch_ref,
                      seg_ref, segt_ref,
                      wqkv_ref, bqkv_ref, wo_ref, bo_ref, ln1g_ref, ln1b_ref,
                      w1_ref, b1_ref, w2_ref, b2_ref, ln2g_ref, ln2b_ref,
                      head_w_ref, head_b_ref,
                      out_ref, h_ref):
    f32 = jnp.float32
    scale = 1.0 / math.sqrt(HEAD_DIM)

    # -- patch embedding: Conv2d(k=P, s=P) == one matmul over extracted patches
    proj = (jnp.dot(patches_ref[...], patch_w_ref[...],
                    preferred_element_type=f32) + patch_b_ref[...])

    # -- token assembly into stacked (B*SEQ_PAD, EMBED) VMEM scratch ----------
    # Per-image 24-row block: rows 0..15 patches(+pos[1:]) (aligned store),
    # row 16 cls(+pos[0]), rows 17..23 zero padding.  Padding rows never
    # contaminate real rows: attention mixes only equal row indices across
    # images, and FFN / LayerNorm are per-row.
    h_ref[...] = jnp.zeros((B * SEQ_PAD, EMBED), f32)
    for b in range(B):
        h_ref[b * SEQ_PAD:b * SEQ_PAD + NPATCH, :] = (
            proj[b * NPATCH:(b + 1) * NPATCH, :] + pos_patch_ref[...])
        h_ref[b * SEQ_PAD + NPATCH:b * SEQ_PAD + NPATCH + 1, :] = cls_pos_ref[...]

    # -- transformer encoder: DEPTH layers, in-kernel loop, post-norm ---------
    @pl.loop(0, DEPTH)
    def _layer(d):
        h = h_ref[...]                                        # (B*SEQ_PAD, E)
        seg = seg_ref[...]                                    # (E, HEADS)
        segt = segt_ref[...]                                  # (HEADS, E)

        # fused QKV projection: one lane-dense (.,64)x(64,192) matmul
        qkv = (jnp.dot(h, wqkv_ref[d], preferred_element_type=f32)
               + bqkv_ref[d])
        q = qkv[:, 0:EMBED] * scale
        k = qkv[:, EMBED:2 * EMBED]
        v = qkv[:, 2 * EMBED:3 * EMBED]

        # Multi-head self-attention.  Attended axis is the image axis
        # (length B, batch_first=False semantics of the original module); the
        # SEQ token positions act as the attention batch.  Per-head dot
        # products over the 16-lane head blocks use the head-segment matrix,
        # batched over all keys t in one matmul per query image s.
        attn_blocks = []
        for s in range(B):
            q_s = q[s * SEQ_PAD:(s + 1) * SEQ_PAD, :]          # (SEQ_PAD, E)
            q_rep = jnp.concatenate([q_s] * B, axis=0)         # (B*SEQ_PAD, E)
            sc = jnp.dot(q_rep * k, seg,
                         preferred_element_type=f32)           # (B*SEQ_PAD, H)
            blocks = [sc[t * SEQ_PAD:(t + 1) * SEQ_PAD, :] for t in range(B)]
            m = blocks[0]
            for t in range(1, B):
                m = jnp.maximum(m, blocks[t])
            ex = [jnp.exp(blk - m) for blk in blocks]
            den = ex[0]
            for t in range(1, B):
                den = den + ex[t]
            inv = pl.reciprocal(den, approx=True)              # EUP slot
            w_cat = jnp.concatenate([e * inv for e in ex], axis=0)
            weighted = jnp.dot(w_cat, segt,
                               preferred_element_type=f32) * v  # (B*SEQ_PAD, E)
            acc = weighted[0:SEQ_PAD, :]
            for t in range(1, B):
                acc = acc + weighted[t * SEQ_PAD:(t + 1) * SEQ_PAD, :]
            attn_blocks.append(acc)
        attn = jnp.concatenate(attn_blocks, axis=0)            # (B*SEQ_PAD, E)

        # out-proj + residual + LayerNorm, FFN (ReLU) + residual + LayerNorm,
        # all on the stacked activation matrix.
        y = h + jnp.dot(attn, wo_ref[d], preferred_element_type=f32) + bo_ref[d]
        y = _layernorm(y, ln1g_ref[d], ln1b_ref[d])
        ff = jnp.maximum(jnp.dot(y, w1_ref[d], preferred_element_type=f32)
                         + b1_ref[d], 0.0)
        z = y + jnp.dot(ff, w2_ref[d], preferred_element_type=f32) + b2_ref[d]
        h_ref[...] = _layernorm(z, ln2g_ref[d], ln2b_ref[d])

    # -- classification head on the B cls rows only (lane-padded to 128) ------
    h_fin = h_ref[...]
    cls_rows = jnp.concatenate(
        [h_fin[s * SEQ_PAD + NPATCH:s * SEQ_PAD + NPATCH + 1, :]
         for s in range(B)], axis=0)                           # (B, E)
    out_ref[...] = (jnp.dot(cls_rows, head_w_ref[...],
                            preferred_element_type=f32) + head_b_ref[...])


# ---------------------------- parameters --------------------------------------

def init_params(key):
    def nrm(k, shape, scale=0.02):
        return scale * jax.random.normal(k, shape, dtype=jnp.float32)

    keys = jax.random.split(key, 8)
    lk = jax.random.split(keys[6], 4)
    return {
        # conv weight (E, C, P, P) stored pre-flattened/transposed as (C*P*P, E)
        'patch_w': nrm(keys[0], (IN_CH * PATCH * PATCH, EMBED)),
        'patch_b': jnp.zeros((EMBED,), jnp.float32),
        'cls': nrm(keys[1], (EMBED,), 1.0),              # nn.Parameter(randn(1,1,E))
        'pos': nrm(keys[2], (SEQ, EMBED), 1.0),          # nn.Parameter(randn(S+1,E))
        'head_w': nrm(keys[3], (EMBED, CLASSES)),
        'head_b': jnp.zeros((CLASSES,), jnp.float32),
        # per-layer weights stacked along DEPTH; q|k|v fused along last axis
        'wqkv': nrm(lk[0], (DEPTH, EMBED, 3 * EMBED)),
        'bqkv': jnp.zeros((DEPTH, 1, 3 * EMBED), jnp.float32),
        'wo': nrm(lk[1], (DEPTH, EMBED, EMBED)),
        'bo': jnp.zeros((DEPTH, 1, EMBED), jnp.float32),
        'ln1_g': jnp.ones((DEPTH, 1, EMBED), jnp.float32),
        'ln1_b': jnp.zeros((DEPTH, 1, EMBED), jnp.float32),
        'w1': nrm(lk[2], (DEPTH, EMBED, FF)),
        'b1': jnp.zeros((DEPTH, 1, FF), jnp.float32),
        'w2': nrm(lk[3], (DEPTH, FF, EMBED)),
        'b2': jnp.zeros((DEPTH, 1, EMBED), jnp.float32),
        'ln2_g': jnp.ones((DEPTH, 1, EMBED), jnp.float32),
        'ln2_b': jnp.zeros((DEPTH, 1, EMBED), jnp.float32),
    }


# ---------------------------- forward pass ------------------------------------

def vit_forward(params, x):
    B = x.shape[0]
    g = IMG // PATCH

    # Patch extraction glue: Conv2d(k=P, s=P) == per-patch matmul.  One tiny
    # relayout of the (B, C, H, W) input; everything downstream is one fused
    # Pallas kernel.  Per-patch flatten order is (c, kh, kw) = conv weight order.
    patches = x.reshape(B, IN_CH, g, PATCH, g, PATCH)
    patches = patches.transpose(0, 2, 4, 1, 3, 5).reshape(
        B * NPATCH, IN_CH * PATCH * PATCH)

    # Head-segment indicator matrices used for per-head reductions in-kernel.
    seg = (jnp.arange(EMBED, dtype=jnp.int32)[:, None] // HEAD_DIM
           == jnp.arange(HEADS, dtype=jnp.int32)[None, :]).astype(jnp.float32)
    segt = seg.T

    # Lane-dense classifier weights (pad 10 -> 128 classes; sliced back below).
    head_w = jnp.zeros((EMBED, CLASSES_PAD), jnp.float32)
    head_w = head_w.at[:, :CLASSES].set(params['head_w'])
    head_b = jnp.zeros((1, CLASSES_PAD), jnp.float32)
    head_b = head_b.at[0, :CLASSES].set(params['head_b'])

    cls_pos = (params['cls'] + params['pos'][0]).reshape(1, EMBED)
    pos_patch = params['pos'][1:]                         # (NPATCH, EMBED)

    args = (patches, params['patch_w'], params['patch_b'].reshape(1, -1),
            cls_pos, pos_patch,
            seg, segt,
            params['wqkv'], params['bqkv'], params['wo'], params['bo'],
            params['ln1_g'], params['ln1_b'],
            params['w1'], params['b1'], params['w2'], params['b2'],
            params['ln2_g'], params['ln2_b'],
            head_w, head_b)

    logits_pad = pl.pallas_call(
        functools.partial(_vit_fused_kernel, B),
        out_shape=jax.ShapeDtypeStruct((B, CLASSES_PAD), jnp.float32),
        in_specs=[pl.BlockSpec(memory_space=pltpu.MemorySpace.VMEM)] * len(args),
        out_specs=pl.BlockSpec(memory_space=pltpu.MemorySpace.VMEM),
        scratch_shapes=[pltpu.VMEM((B * SEQ_PAD, EMBED), jnp.float32)],
        compiler_params=pltpu.CompilerParams(
            vmem_limit_bytes=32 * 1024 * 1024),
    )(*args)
    return logits_pad[:, :CLASSES]


if __name__ == "__main__":
    key = jax.random.PRNGKey(0)
    pkey, xkey = jax.random.split(key)
    params = init_params(pkey)

    B = 2
    x = jax.random.normal(xkey, (B, IN_CH, IMG, IMG), dtype=jnp.float32)

    out = jax.jit(vit_forward)(params, x)
    out = jax.block_until_ready(out)
    assert out.shape == (B, CLASSES) and out.dtype == jnp.float32
    assert bool(jnp.all(jnp.isfinite(out)))
    print("KERNEL_OK")
</pallas_src>

<mosaic_0001>
module attributes {stable_mosaic.version = 11 : i64} {
  func.func @_vit_fused_kernel(%arg0: memref<32x192xf32, #tpu.memory_space<vmem>>, %arg1: memref<192x64xf32, #tpu.memory_space<vmem>>, %arg2: memref<1x64xf32, #tpu.memory_space<vmem>>, %arg3: memref<1x64xf32, #tpu.memory_space<vmem>>, %arg4: memref<16x64xf32, #tpu.memory_space<vmem>>, %arg5: memref<64x4xf32, #tpu.memory_space<vmem>>, %arg6: memref<4x64xf32, #tpu.memory_space<vmem>>, %arg7: memref<6x64x192xf32, #tpu.memory_space<vmem>>, %arg8: memref<6x1x192xf32, #tpu.memory_space<vmem>>, %arg9: memref<6x64x64xf32, #tpu.memory_space<vmem>>, %arg10: memref<6x1x64xf32, #tpu.memory_space<vmem>>, %arg11: memref<6x1x64xf32, #tpu.memory_space<vmem>>, %arg12: memref<6x1x64xf32, #tpu.memory_space<vmem>>, %arg13: memref<6x64x256xf32, #tpu.memory_space<vmem>>, %arg14: memref<6x1x256xf32, #tpu.memory_space<vmem>>, %arg15: memref<6x256x64xf32, #tpu.memory_space<vmem>>, %arg16: memref<6x1x64xf32, #tpu.memory_space<vmem>>, %arg17: memref<6x1x64xf32, #tpu.memory_space<vmem>>, %arg18: memref<6x1x64xf32, #tpu.memory_space<vmem>>, %arg19: memref<64x128xf32, #tpu.memory_space<vmem>>, %arg20: memref<1x128xf32, #tpu.memory_space<vmem>>, %arg21: memref<2x128xf32, #tpu.memory_space<vmem>>, %arg22: memref<48x64xf32, #tpu.memory_space<vmem>>) attributes {dimension_semantics = [], scalar_prefetch = 0 : i64, scratch_operands = 1 : i64, tpu.core_type = #tpu.core_type<tc>} {
    %c0 = arith.constant 0 : index
    %c0_0 = arith.constant 0 : index
    %0 = vector.load %arg0[%c0, %c0_0] : memref<32x192xf32, #tpu.memory_space<vmem>>, vector<32x192xf32>
    %c0_1 = arith.constant 0 : index
    %c0_2 = arith.constant 0 : index
    %1 = vector.load %arg1[%c0_1, %c0_2] : memref<192x64xf32, #tpu.memory_space<vmem>>, vector<192x64xf32>
    %cst = arith.constant dense<0.000000e+00> : vector<32x64xf32>
    %2 = tpu.matmul %0, %1, %cst {dimension_numbers = #tpu.dot_dimension_numbers<[1], [0], [0], [1], [0, 0, 1, 1], [], []>} : vector<32x192xf32>, vector<192x64xf32>, vector<32x64xf32> -> vector<32x64xf32>
    %c0_3 = arith.constant 0 : index
    %c0_4 = arith.constant 0 : index
    %3 = vector.load %arg2[%c0_3, %c0_4] : memref<1x64xf32, #tpu.memory_space<vmem>>, vector<1x64xf32>
    %4 = vector.broadcast %3 : vector<1x64xf32> to vector<32x64xf32>
    %5 = arith.addf %2, %4 : vector<32x64xf32>
    %cst_5 = arith.constant 0.000000e+00 : f32
    %6 = vector.broadcast %cst_5 : f32 to vector<48x64xf32>
    %c0_6 = arith.constant 0 : index
    %c0_7 = arith.constant 0 : index
    %7 = vector.load %arg22[%c0_6, %c0_7] : memref<48x64xf32, #tpu.memory_space<vmem>>, vector<48x64xf32>
    tpu.vector_store %arg22[%c0_6, %c0_7], %6 {strides = array<i32>} : memref<48x64xf32, #tpu.memory_space<vmem>>, vector<48x64xf32>,
    %8 = vector.extract_strided_slice %5 {offsets = [0, 0], sizes = [16, 64], strides = [1, 1]} : vector<32x64xf32> to vector<16x64xf32>
    %c0_8 = arith.constant 0 : index
    %c0_9 = arith.constant 0 : index
    %9 = vector.load %arg4[%c0_8, %c0_9] : memref<16x64xf32, #tpu.memory_space<vmem>>, vector<16x64xf32>
    %10 = arith.addf %8, %9 : vector<16x64xf32>
    %c0_10 = arith.constant 0 : index
    %c0_11 = arith.constant 0 : index
    %11 = vector.load %arg22[%c0_10, %c0_11] : memref<48x64xf32, #tpu.memory_space<vmem>>, vector<16x64xf32>
    tpu.vector_store %arg22[%c0_10, %c0_11], %10 {strides = array<i32>} : memref<48x64xf32, #tpu.memory_space<vmem>>, vector<16x64xf32>,
    %c0_12 = arith.constant 0 : index
    %c0_13 = arith.constant 0 : index
    %12 = vector.load %arg3[%c0_12, %c0_13] : memref<1x64xf32, #tpu.memory_space<vmem>>, vector<1x64xf32>
    %c16 = arith.constant 16 : index
    %c0_14 = arith.constant 0 : index
    %13 = vector.load %arg22[%c16, %c0_14] : memref<48x64xf32, #tpu.memory_space<vmem>>, vector<1x64xf32>
    tpu.vector_store %arg22[%c16, %c0_14], %12 {strides = array<i32>} : memref<48x64xf32, #tpu.memory_space<vmem>>, vector<1x64xf32>,
    %14 = vector.extract_strided_slice %5 {offsets = [16, 0], sizes = [16, 64], strides = [1, 1]} : vector<32x64xf32> to vector<16x64xf32>
    %c0_15 = arith.constant 0 : index
    %c0_16 = arith.constant 0 : index
    %15 = vector.load %arg4[%c0_15, %c0_16] : memref<16x64xf32, #tpu.memory_space<vmem>>, vector<16x64xf32>
    %16 = arith.addf %14, %15 : vector<16x64xf32>
    %c24 = arith.constant 24 : index
    %c0_17 = arith.constant 0 : index
    %17 = vector.load %arg22[%c24, %c0_17] : memref<48x64xf32, #tpu.memory_space<vmem>>, vector<16x64xf32>
    tpu.vector_store %arg22[%c24, %c0_17], %16 {strides = array<i32>} : memref<48x64xf32, #tpu.memory_space<vmem>>, vector<16x64xf32>,
    %c0_18 = arith.constant 0 : index
    %c0_19 = arith.constant 0 : index
    %18 = vector.load %arg3[%c0_18, %c0_19] : memref<1x64xf32, #tpu.memory_space<vmem>>, vector<1x64xf32>
    %c40 = arith.constant 40 : index
    %c0_20 = arith.constant 0 : index
    %19 = vector.load %arg22[%c40, %c0_20] : memref<48x64xf32, #tpu.memory_space<vmem>>, vector<1x64xf32>
    tpu.vector_store %arg22[%c40, %c0_20], %18 {strides = array<i32>} : memref<48x64xf32, #tpu.memory_space<vmem>>, vector<1x64xf32>,
    %c0_i32 = arith.constant 0 : i32
    %c6_i32 = arith.constant 6 : i32
    %20 = arith.addi %c0_i32, %c6_i32 : i32
    %c1_i32 = arith.constant 1 : i32
    scf.for %arg23 = %c0_i32 to %20 step %c1_i32  : i32 {
      %c1_i32_31 = arith.constant 1 : i32
      %31 = arith.muli %arg23, %c1_i32_31 : i32
      %c0_i32_32 = arith.constant 0 : i32
      %32 = arith.addi %c0_i32_32, %31 : i32
      %c0_33 = arith.constant 0 : index
      %c0_34 = arith.constant 0 : index
      %33 = vector.load %arg22[%c0_33, %c0_34] : memref<48x64xf32, #tpu.memory_space<vmem>>, vector<48x64xf32>
      %c0_35 = arith.constant 0 : index
      %c0_36 = arith.constant 0 : index
      %34 = vector.load %arg5[%c0_35, %c0_36] : memref<64x4xf32, #tpu.memory_space<vmem>>, vector<64x4xf32>
      %c0_37 = arith.constant 0 : index
      %c0_38 = arith.constant 0 : index
      %35 = vector.load %arg6[%c0_37, %c0_38] : memref<4x64xf32, #tpu.memory_space<vmem>>, vector<4x64xf32>
      %36 = arith.index_cast %32 : i32 to index
      %c0_39 = arith.constant 0 : index
      %c0_40 = arith.constant 0 : index
      %37 = vector.load %arg7[%36, %c0_39, %c0_40] : memref<6x64x192xf32, #tpu.memory_space<vmem>>, vector<1x64x192xf32>
      %38 = vector.shape_cast %37 : vector<1x64x192xf32> to vector<64x192xf32>
      %cst_41 = arith.constant dense<0.000000e+00> : vector<48x192xf32>
      %39 = tpu.matmul %33, %38, %cst_41 {dimension_numbers = #tpu.dot_dimension_numbers<[1], [0], [0], [1], [0, 0, 1, 1], [], []>} : vector<48x64xf32>, vector<64x192xf32>, vector<48x192xf32> -> vector<48x192xf32>
      %40 = arith.index_cast %32 : i32 to index
      %c0_42 = arith.constant 0 : index
      %c0_43 = arith.constant 0 : index
      %41 = vector.load %arg8[%40, %c0_42, %c0_43] : memref<6x1x192xf32, #tpu.memory_space<vmem>>, vector<1x1x192xf32>
      %42 = vector.shape_cast %41 : vector<1x1x192xf32> to vector<1x192xf32>
      %43 = vector.broadcast %42 : vector<1x192xf32> to vector<48x192xf32>
      %44 = arith.addf %39, %43 : vector<48x192xf32>
      %45 = vector.extract_strided_slice %44 {offsets = [0, 0], sizes = [48, 64], strides = [1, 1]} : vector<48x192xf32> to vector<48x64xf32>
      %cst_44 = arith.constant 2.500000e-01 : f32
      %46 = vector.broadcast %cst_44 : f32 to vector<48x64xf32>
      %47 = arith.mulf %45, %46 : vector<48x64xf32>
      %48 = vector.extract_strided_slice %44 {offsets = [0, 64], sizes = [48, 64], strides = [1, 1]} : vector<48x192xf32> to vector<48x64xf32>
      %49 = vector.extract_strided_slice %44 {offsets = [0, 128], sizes = [48, 64], strides = [1, 1]} : vector<48x192xf32> to vector<48x64xf32>
      %50 = vector.extract_strided_slice %47 {offsets = [0, 0], sizes = [24, 64], strides = [1, 1]} : vector<48x64xf32> to vector<24x64xf32>
      %51 = tpu.concatenate %50, %50 in 0 : vector<24x64xf32>, vector<24x64xf32> -> vector<48x64xf32>
      %52 = arith.mulf %51, %48 : vector<48x64xf32>
      %cst_45 = arith.constant dense<0.000000e+00> : vector<48x4xf32>
      %53 = tpu.matmul %52, %34, %cst_45 {dimension_numbers = #tpu.dot_dimension_numbers<[1], [0], [0], [1], [0, 0, 1, 1], [], []>} : vector<48x64xf32>, vector<64x4xf32>, vector<48x4xf32> -> vector<48x4xf32>
      %54 = vector.extract_strided_slice %53 {offsets = [0, 0], sizes = [24, 4], strides = [1, 1]} : vector<48x4xf32> to vector<24x4xf32>
      %55 = vector.extract_strided_slice %53 {offsets = [24, 0], sizes = [24, 4], strides = [1, 1]} : vector<48x4xf32> to vector<24x4xf32>
      %56 = arith.maximumf %54, %55 : vector<24x4xf32>
      %57 = arith.subf %54, %56 : vector<24x4xf32>
      %58 = math.exp %57 : vector<24x4xf32>
      %59 = arith.subf %55, %56 : vector<24x4xf32>
      %60 = math.exp %59 : vector<24x4xf32>
      %61 = arith.addf %58, %60 : vector<24x4xf32>
      %62 = tpu.reciprocal %61 {approx = true} : vector<24x4xf32> -> vector<24x4xf32>
      %63 = arith.mulf %58, %62 : vector<24x4xf32>
      %64 = arith.mulf %60, %62 : vector<24x4xf32>
      %65 = tpu.concatenate %63, %64 in 0 : vector<24x4xf32>, vector<24x4xf32> -> vector<48x4xf32>
      %cst_46 = arith.constant dense<0.000000e+00> : vector<48x64xf32>
      %66 = tpu.matmul %65, %35, %cst_46 {dimension_numbers = #tpu.dot_dimension_numbers<[1], [0], [0], [1], [0, 0, 1, 1], [], []>} : vector<48x4xf32>, vector<4x64xf32>, vector<48x64xf32> -> vector<48x64xf32>
      %67 = arith.mulf %66, %49 : vector<48x64xf32>
      %68 = vector.extract_strided_slice %67 {offsets = [0, 0], sizes = [24, 64], strides = [1, 1]} : vector<48x64xf32> to vector<24x64xf32>
      %69 = vector.extract_strided_slice %67 {offsets = [24, 0], sizes = [24, 64], strides = [1, 1]} : vector<48x64xf32> to vector<24x64xf32>
      %70 = arith.addf %68, %69 : vector<24x64xf32>
      %71 = vector.extract_strided_slice %47 {offsets = [24, 0], sizes = [24, 64], strides = [1, 1]} : vector<48x64xf32> to vector<24x64xf32>
      %72 = tpu.concatenate %71, %71 in 0 : vector<24x64xf32>, vector<24x64xf32> -> vector<48x64xf32>
      %73 = arith.mulf %72, %48 : vector<48x64xf32>
      %cst_47 = arith.constant dense<0.000000e+00> : vector<48x4xf32>
      %74 = tpu.matmul %73, %34, %cst_47 {dimension_numbers = #tpu.dot_dimension_numbers<[1], [0], [0], [1], [0, 0, 1, 1], [], []>} : vector<48x64xf32>, vector<64x4xf32>, vector<48x4xf32> -> vector<48x4xf32>
      %75 = vector.extract_strided_slice %74 {offsets = [0, 0], sizes = [24, 4], strides = [1, 1]} : vector<48x4xf32> to vector<24x4xf32>
      %76 = vector.extract_strided_slice %74 {offsets = [24, 0], sizes = [24, 4], strides = [1, 1]} : vector<48x4xf32> to vector<24x4xf32>
      %77 = arith.maximumf %75, %76 : vector<24x4xf32>
      %78 = arith.subf %75, %77 : vector<24x4xf32>
      %79 = math.exp %78 : vector<24x4xf32>
      %80 = arith.subf %76, %77 : vector<24x4xf32>
      %81 = math.exp %80 : vector<24x4xf32>
      %82 = arith.addf %79, %81 : vector<24x4xf32>
      %83 = tpu.reciprocal %82 {approx = true} : vector<24x4xf32> -> vector<24x4xf32>
      %84 = arith.mulf %79, %83 : vector<24x4xf32>
      %85 = arith.mulf %81, %83 : vector<24x4xf32>
      %86 = tpu.concatenate %84, %85 in 0 : vector<24x4xf32>, vector<24x4xf32> -> vector<48x4xf32>
      %cst_48 = arith.constant dense<0.000000e+00> : vector<48x64xf32>
      %87 = tpu.matmul %86, %35, %cst_48 {dimension_numbers = #tpu.dot_dimension_numbers<[1], [0], [0], [1], [0, 0, 1, 1], [], []>} : vector<48x4xf32>, vector<4x64xf32>, vector<48x64xf32> -> vector<48x64xf32>
      %88 = arith.mulf %87, %49 : vector<48x64xf32>
      %89 = vector.extract_strided_slice %88 {offsets = [0, 0], sizes = [24, 64], strides = [1, 1]} : vector<48x64xf32> to vector<24x64xf32>
      %90 = vector.extract_strided_slice %88 {offsets = [24, 0], sizes = [24, 64], strides = [1, 1]} : vector<48x64xf32> to vector<24x64xf32>
      %91 = arith.addf %89, %90 : vector<24x64xf32>
      %92 = tpu.concatenate %70, %91 in 0 : vector<24x64xf32>, vector<24x64xf32> -> vector<48x64xf32>
      %93 = arith.index_cast %32 : i32 to index
      %c0_49 = arith.constant 0 : index
      %c0_50 = arith.constant 0 : index
      %94 = vector.load %arg9[%93, %c0_49, %c0_50] : memref<6x64x64xf32, #tpu.memory_space<vmem>>, vector<1x64x64xf32>
      %95 = vector.shape_cast %94 : vector<1x64x64xf32> to vector<64x64xf32>
      %cst_51 = arith.constant dense<0.000000e+00> : vector<48x64xf32>
      %96 = tpu.matmul %92, %95, %cst_51 {dimension_numbers = #tpu.dot_dimension_numbers<[1], [0], [0], [1], [0, 0, 1, 1], [], []>} : vector<48x64xf32>, vector<64x64xf32>, vector<48x64xf32> -> vector<48x64xf32>
      %97 = arith.addf %33, %96 : vector<48x64xf32>
      %98 = arith.index_cast %32 : i32 to index
      %c0_52 = arith.constant 0 : index
      %c0_53 = arith.constant 0 : index
      %99 = vector.load %arg10[%98, %c0_52, %c0_53] : memref<6x1x64xf32, #tpu.memory_space<vmem>>, vector<1x1x64xf32>
      %100 = vector.shape_cast %99 : vector<1x1x64xf32> to vector<1x64xf32>
      %101 = vector.broadcast %100 : vector<1x64xf32> to vector<48x64xf32>
      %102 = arith.addf %97, %101 : vector<48x64xf32>
      %103 = arith.index_cast %32 : i32 to index
      %c0_54 = arith.constant 0 : index
      %c0_55 = arith.constant 0 : index
      %104 = vector.load %arg11[%103, %c0_54, %c0_55] : memref<6x1x64xf32, #tpu.memory_space<vmem>>, vector<1x1x64xf32>
      %105 = vector.shape_cast %104 : vector<1x1x64xf32> to vector<1x64xf32>
      %106 = arith.index_cast %32 : i32 to index
      %c0_56 = arith.constant 0 : index
      %c0_57 = arith.constant 0 : index
      %107 = vector.load %arg12[%106, %c0_56, %c0_57] : memref<6x1x64xf32, #tpu.memory_space<vmem>>, vector<1x1x64xf32>
      %108 = vector.shape_cast %107 : vector<1x1x64xf32> to vector<1x64xf32>
      %cst_58 = arith.constant dense<0.000000e+00> : vector<48xf32>
      %109 = vector.multi_reduction <add>, %102, %cst_58 [1] : vector<48x64xf32> to vector<48xf32>
      %110 = vector.shape_cast %109 : vector<48xf32> to vector<48x1xf32>
      %cst_59 = arith.constant 6.400000e+01 : f32
      %111 = vector.broadcast %cst_59 : f32 to vector<48x1xf32>
      %112 = arith.divf %110, %111 : vector<48x1xf32>
      %113 = vector.broadcast %112 : vector<48x1xf32> to vector<48x64xf32>
      %114 = arith.subf %102, %113 : vector<48x64xf32>
      %115 = arith.mulf %114, %114 : vector<48x64xf32>
      %cst_60 = arith.constant dense<0.000000e+00> : vector<48xf32>
      %116 = vector.multi_reduction <add>, %115, %cst_60 [1] : vector<48x64xf32> to vector<48xf32>
      %117 = vector.shape_cast %116 : vector<48xf32> to vector<48x1xf32>
      %cst_61 = arith.constant 6.400000e+01 : f32
      %118 = vector.broadcast %cst_61 : f32 to vector<48x1xf32>
      %119 = arith.divf %117, %118 : vector<48x1xf32>
      %120 = vector.broadcast %112 : vector<48x1xf32> to vector<48x64xf32>
      %121 = arith.subf %102, %120 : vector<48x64xf32>
      %cst_62 = arith.constant 9.99999974E-6 : f32
      %122 = vector.broadcast %cst_62 : f32 to vector<48x1xf32>
      %123 = arith.addf %119, %122 : vector<48x1xf32>
      %124 = math.rsqrt %123 : vector<48x1xf32>
      %125 = vector.broadcast %124 : vector<48x1xf32> to vector<48x64xf32>
      %126 = arith.mulf %121, %125 : vector<48x64xf32>
      %127 = vector.broadcast %105 : vector<1x64xf32> to vector<48x64xf32>
      %128 = arith.mulf %126, %127 : vector<48x64xf32>
      %129 = vector.broadcast %108 : vector<1x64xf32> to vector<48x64xf32>
      %130 = arith.addf %128, %129 : vector<48x64xf32>
      %131 = arith.index_cast %32 : i32 to index
      %c0_63 = arith.constant 0 : index
      %c0_64 = arith.constant 0 : index
      %132 = vector.load %arg13[%131, %c0_63, %c0_64] : memref<6x64x256xf32, #tpu.memory_space<vmem>>, vector<1x64x256xf32>
      %133 = vector.shape_cast %132 : vector<1x64x256xf32> to vector<64x256xf32>
      %cst_65 = arith.constant dense<0.000000e+00> : vector<48x256xf32>
      %134 = tpu.matmul %130, %133, %cst_65 {dimension_numbers = #tpu.dot_dimension_numbers<[1], [0], [0], [1], [0, 0, 1, 1], [], []>} : vector<48x64xf32>, vector<64x256xf32>, vector<48x256xf32> -> vector<48x256xf32>
      %135 = arith.index_cast %32 : i32 to index
      %c0_66 = arith.constant 0 : index
      %c0_67 = arith.constant 0 : index
      %136 = vector.load %arg14[%135, %c0_66, %c0_67] : memref<6x1x256xf32, #tpu.memory_space<vmem>>, vector<1x1x256xf32>
      %137 = vector.shape_cast %136 : vector<1x1x256xf32> to vector<1x256xf32>
      %138 = vector.broadcast %137 : vector<1x256xf32> to vector<48x256xf32>
      %139 = arith.addf %134, %138 : vector<48x256xf32>
      %cst_68 = arith.constant 0.000000e+00 : f32
      %140 = vector.broadcast %cst_68 : f32 to vector<48x256xf32>
      %141 = arith.maximumf %139, %140 : vector<48x256xf32>
      %142 = arith.index_cast %32 : i32 to index
      %c0_69 = arith.constant 0 : index
      %c0_70 = arith.constant 0 : index
      %143 = vector.load %arg15[%142, %c0_69, %c0_70] : memref<6x256x64xf32, #tpu.memory_space<vmem>>, vector<1x256x64xf32>
      %144 = vector.shape_cast %143 : vector<1x256x64xf32> to vector<256x64xf32>
      %cst_71 = arith.constant dense<0.000000e+00> : vector<48x64xf32>
      %145 = tpu.matmul %141, %144, %cst_71 {dimension_numbers = #tpu.dot_dimension_numbers<[1], [0], [0], [1], [0, 0, 1, 1], [], []>} : vector<48x256xf32>, vector<256x64xf32>, vector<48x64xf32> -> vector<48x64xf32>
      %146 = arith.addf %130, %145 : vector<48x64xf32>
      %147 = arith.index_cast %32 : i32 to index
      %c0_72 = arith.constant 0 : index
      %c0_73 = arith.constant 0 : index
      %148 = vector.load %arg16[%147, %c0_72, %c0_73] : memref<6x1x64xf32, #tpu.memory_space<vmem>>, vector<1x1x64xf32>
      %149 = vector.shape_cast %148 : vector<1x1x64xf32> to vector<1x64xf32>
      %150 = vector.broadcast %149 : vector<1x64xf32> to vector<48x64xf32>
      %151 = arith.addf %146, %150 : vector<48x64xf32>
      %152 = arith.index_cast %32 : i32 to index
      %c0_74 = arith.constant 0 : index
      %c0_75 = arith.constant 0 : index
      %153 = vector.load %arg17[%152, %c0_74, %c0_75] : memref<6x1x64xf32, #tpu.memory_space<vmem>>, vector<1x1x64xf32>
      %154 = vector.shape_cast %153 : vector<1x1x64xf32> to vector<1x64xf32>
      %155 = arith.index_cast %32 : i32 to index
      %c0_76 = arith.constant 0 : index
      %c0_77 = arith.constant 0 : index
      %156 = vector.load %arg18[%155, %c0_76, %c0_77] : memref<6x1x64xf32, #tpu.memory_space<vmem>>, vector<1x1x64xf32>
      %157 = vector.shape_cast %156 : vector<1x1x64xf32> to vector<1x64xf32>
      %cst_78 = arith.constant dense<0.000000e+00> : vector<48xf32>
      %158 = vector.multi_reduction <add>, %151, %cst_78 [1] : vector<48x64xf32> to vector<48xf32>
      %159 = vector.shape_cast %158 : vector<48xf32> to vector<48x1xf32>
      %cst_79 = arith.constant 6.400000e+01 : f32
      %160 = vector.broadcast %cst_79 : f32 to vector<48x1xf32>
      %161 = arith.divf %159, %160 : vector<48x1xf32>
      %162 = vector.broadcast %161 : vector<48x1xf32> to vector<48x64xf32>
      %163 = arith.subf %151, %162 : vector<48x64xf32>
      %164 = arith.mulf %163, %163 : vector<48x64xf32>
      %cst_80 = arith.constant dense<0.000000e+00> : vector<48xf32>
      %165 = vector.multi_reduction <add>, %164, %cst_80 [1] : vector<48x64xf32> to vector<48xf32>
      %166 = vector.shape_cast %165 : vector<48xf32> to vector<48x1xf32>
      %cst_81 = arith.constant 6.400000e+01 : f32
      %167 = vector.broadcast %cst_81 : f32 to vector<48x1xf32>
      %168 = arith.divf %166, %167 : vector<48x1xf32>
      %169 = vector.broadcast %161 : vector<48x1xf32> to vector<48x64xf32>
      %170 = arith.subf %151, %169 : vector<48x64xf32>
      %cst_82 = arith.constant 9.99999974E-6 : f32
      %171 = vector.broadcast %cst_82 : f32 to vector<48x1xf32>
      %172 = arith.addf %168, %171 : vector<48x1xf32>
      %173 = math.rsqrt %172 : vector<48x1xf32>
      %174 = vector.broadcast %173 : vector<48x1xf32> to vector<48x64xf32>
      %175 = arith.mulf %170, %174 : vector<48x64xf32>
      %176 = vector.broadcast %154 : vector<1x64xf32> to vector<48x64xf32>
      %177 = arith.mulf %175, %176 : vector<48x64xf32>
      %178 = vector.broadcast %157 : vector<1x64xf32> to vector<48x64xf32>
      %179 = arith.addf %177, %178 : vector<48x64xf32>
      %c0_83 = arith.constant 0 : index
      %c0_84 = arith.constant 0 : index
      %180 = vector.load %arg22[%c0_83, %c0_84] : memref<48x64xf32, #tpu.memory_space<vmem>>, vector<48x64xf32>
      tpu.vector_store %arg22[%c0_83, %c0_84], %179 {strides = array<i32>} : memref<48x64xf32, #tpu.memory_space<vmem>>, vector<48x64xf32>,
    }
    %c6_i32_21 = arith.constant 6 : i32
    %c0_22 = arith.constant 0 : index
    %c0_23 = arith.constant 0 : index
    %21 = vector.load %arg22[%c0_22, %c0_23] : memref<48x64xf32, #tpu.memory_space<vmem>>, vector<48x64xf32>
    %22 = vector.extract_strided_slice %21 {offsets = [16, 0], sizes = [1, 64], strides = [1, 1]} : vector<48x64xf32> to vector<1x64xf32>
    %23 = vector.extract_strided_slice %21 {offsets = [40, 0], sizes = [1, 64], strides = [1, 1]} : vector<48x64xf32> to vector<1x64xf32>
    %24 = tpu.concatenate %22, %23 in 0 : vector<1x64xf32>, vector<1x64xf32> -> vector<2x64xf32>
    %c0_24 = arith.constant 0 : index
    %c0_25 = arith.constant 0 : index
    %25 = vector.load %arg19[%c0_24, %c0_25] : memref<64x128xf32, #tpu.memory_space<vmem>>, vector<64x128xf32>
    %cst_26 = arith.constant dense<0.000000e+00> : vector<2x128xf32>
    %26 = tpu.matmul %24, %25, %cst_26 {dimension_numbers = #tpu.dot_dimension_numbers<[1], [0], [0], [1], [0, 0, 1, 1], [], []>} : vector<2x64xf32>, vector<64x128xf32>, vector<2x128xf32> -> vector<2x128xf32>
    %c0_27 = arith.constant 0 : index
    %c0_28 = arith.constant 0 : index
    %27 = vector.load %arg20[%c0_27, %c0_28] : memref<1x128xf32, #tpu.memory_space<vmem>>, vector<1x128xf32>
    %28 = vector.broadcast %27 : vector<1x128xf32> to vector<2x128xf32>
    %29 = arith.addf %26, %28 : vector<2x128xf32>
    %c0_29 = arith.constant 0 : index
    %c0_30 = arith.constant 0 : index
    %30 = vector.load %arg21[%c0_29, %c0_30] : memref<2x128xf32, #tpu.memory_space<vmem>>, vector<2x128xf32>
    tpu.vector_store %arg21[%c0_29, %c0_30], %29 {strides = array<i32>} : memref<2x128xf32, #tpu.memory_space<vmem>>, vector<2x128xf32>,
    return
  }
}

</mosaic_0001>

<llo_original>
// kernel: vit_forward.1
$region0: #{vit_forward.1}
  #allocation0 [shape = 'u32[]', space=smem, size = 0x4, offset = 0x4, fixed_abs, tag = 'smem constant byte address 0x4 - core index']
  #allocation1 [shape = 'u32[144,128]{1,0:T(1,128)}', space=vmem, size = 0x12000, scoped, tag = 'internal scratch']
  #allocation2 [shape = 'f32[48,64]{1,0:T(8,128)}', space=vmem, size = 0x6000, scoped, tag = 'scratch operand']
  %s0 = inlined_call_operand.vmem [shape: f32[32,192], index: 0, kind: input, shape index: {}]
  %s1 = inlined_call_operand.vmem [shape: f32[192,64], index: 1, kind: input, shape index: {}]
  %s2 = inlined_call_operand.vmem [shape: f32[1,64], index: 2, kind: input, shape index: {}]
  %s3 = inlined_call_operand.vmem [shape: f32[1,64], index: 3, kind: input, shape index: {}]
  %s4 = inlined_call_operand.vmem [shape: f32[16,64], index: 4, kind: input, shape index: {}]
  %s5 = inlined_call_operand.vmem [shape: f32[64,4], index: 5, kind: input, shape index: {}]
  %s6 = inlined_call_operand.vmem [shape: f32[4,64], index: 6, kind: input, shape index: {}]
  %s7 = inlined_call_operand.vmem [shape: f32[6,64,192], index: 7, kind: input, shape index: {}]
  %s8 = inlined_call_operand.vmem [shape: f32[6,1,192], index: 8, kind: input, shape index: {}]
  %s9 = inlined_call_operand.vmem [shape: f32[6,64,64], index: 9, kind: input, shape index: {}]
  %s10 = inlined_call_operand.vmem [shape: f32[6,1,64], index: 10, kind: input, shape index: {}]
  %s11 = inlined_call_operand.vmem [shape: f32[6,1,64], index: 11, kind: input, shape index: {}]
  %s12 = inlined_call_operand.vmem [shape: f32[6,1,64], index: 12, kind: input, shape index: {}]
  %s13 = inlined_call_operand.vmem [shape: f32[6,64,256], index: 13, kind: input, shape index: {}]
  %s14 = inlined_call_operand.vmem [shape: f32[6,1,256], index: 14, kind: input, shape index: {}]
  %s15 = inlined_call_operand.vmem [shape: f32[6,256,64], index: 15, kind: input, shape index: {}]
  %s16 = inlined_call_operand.vmem [shape: f32[6,1,64], index: 16, kind: input, shape index: {}]
  %s17 = inlined_call_operand.vmem [shape: f32[6,1,64], index: 17, kind: input, shape index: {}]
  %s18 = inlined_call_operand.vmem [shape: f32[6,1,64], index: 18, kind: input, shape index: {}]
  %s19 = inlined_call_operand.vmem [shape: f32[64,128], index: 19, kind: input, shape index: {}]
  %s20 = inlined_call_operand.vmem [shape: f32[1,128], index: 20, kind: input, shape index: {}]
  %s21 = inlined_call_operand.hbm [shape: f32[2,128], index: 21, kind: output, shape index: {}]
  %s22 = sld [smem:[#allocation0]]
  $region101: #{vit_forward.1} parent=0
    _
  %s24 = ssub.s32 1, %s22
  %s25 = scalar_select 0, %s24, %s22
  $region1: #{vit_forward.1} parent=0
    #allocation3 [shape = 'u8[1024]{0}', space=vmem, size = 0x400, scoped, tag = 'output window, operand 0, single buffered']
    #allocation4 [shape = 's32[1]{0}', space=sflag, size = 0x4, scoped, tag = 'scoped memory for vit_forward.1']
    %26 = vsyncpa [#allocation4], 0
    // Predicated region
    $region2: #{vit_forward.1} parent=1 // pred_check
      _
    $region3: #{vit_forward.1} parent=1 // pred_check_branch
      %28 = sbr.rel (0) target = $region5
    $region4: #{vit_forward.1} parent=1 // pred_region
      _
    $region5: #{vit_forward.1} parent=1 // pred_fallthru
      _
    // Predicated region
    $region6: #{vit_forward.1} parent=1 // pred_check
      _
    $region7: #{vit_forward.1} parent=1 // pred_check_branch
      %30 = sbr.rel (0) target = $region9
    $region8: #{vit_forward.1} parent=1 // pred_region
      _
    $region9: #{vit_forward.1} parent=1 // pred_fallthru
      _
    // Predicated region
    $region10: #{vit_forward.1} parent=1 // pred_check
      _
    $region11: #{vit_forward.1} parent=1 // pred_check_branch
      %32 = sbr.rel (0) target = $region13
    $region12: #{vit_forward.1} parent=1 // pred_region
      _
    $region13: #{vit_forward.1} parent=1 // pred_fallthru
      _
    // Predicated region
    $region14: #{vit_forward.1} parent=1 // pred_check
      _
    $region15: #{vit_forward.1} parent=1 // pred_check_branch
      %34 = sbr.rel (0) target = $region17
    $region16: #{vit_forward.1} parent=1 // pred_region
      _
    $region17: #{vit_forward.1} parent=1 // pred_fallthru
      _
    // Predicated region
    $region18: #{vit_forward.1} parent=1 // pred_check
      _
    $region19: #{vit_forward.1} parent=1 // pred_check_branch
      %36 = sbr.rel (0) target = $region21
    $region20: #{vit_forward.1} parent=1 // pred_region
      _
    $region21: #{vit_forward.1} parent=1 // pred_fallthru
      _
    // Predicated region
    $region22: #{vit_forward.1} parent=1 // pred_check
      _
    $region23: #{vit_forward.1} parent=1 // pred_check_branch
      %38 = sbr.rel (0) target = $region25
    $region24: #{vit_forward.1} parent=1 // pred_region
      _
    $region25: #{vit_forward.1} parent=1 // pred_fallthru
      _
    // Predicated region
    $region26: #{vit_forward.1} parent=1 // pred_check
      _
    $region27: #{vit_forward.1} parent=1 // pred_check_branch
      %40 = sbr.rel (0) target = $region29
    $region28: #{vit_forward.1} parent=1 // pred_region
      _
    $region29: #{vit_forward.1} parent=1 // pred_fallthru
      _
    // Predicated region
    $region30: #{vit_forward.1} parent=1 // pred_check
      _
    $region31: #{vit_forward.1} parent=1 // pred_check_branch
      %42 = sbr.rel (0) target = $region33
    $region32: #{vit_forward.1} parent=1 // pred_region
      _
    $region33: #{vit_forward.1} parent=1 // pred_fallthru
      _
    // Predicated region
    $region34: #{vit_forward.1} parent=1 // pred_check
      _
    $region35: #{vit_forward.1} parent=1 // pred_check_branch
      %44 = sbr.rel (0) target = $region37
    $region36: #{vit_forward.1} parent=1 // pred_region
      _
    $region37: #{vit_forward.1} parent=1 // pred_fallthru
      _
    // Predicated region
    $region38: #{vit_forward.1} parent=1 // pred_check
      _
    $region39: #{vit_forward.1} parent=1 // pred_check_branch
      %46 = sbr.rel (0) target = $region41
    $region40: #{vit_forward.1} parent=1 // pred_region
      _
    $region41: #{vit_forward.1} parent=1 // pred_fallthru
      _
    // Predicated region
    $region42: #{vit_forward.1} parent=1 // pred_check
      _
    $region43: #{vit_forward.1} parent=1 // pred_check_branch
      %48 = sbr.rel (0) target = $region45
    $region44: #{vit_forward.1} parent=1 // pred_region
      _
    $region45: #{vit_forward.1} parent=1 // pred_fallthru
      _
    // Predicated region
    $region46: #{vit_forward.1} parent=1 // pred_check
      _
    $region47: #{vit_forward.1} parent=1 // pred_check_branch
      %50 = sbr.rel (0) target = $region49
    $region48: #{vit_forward.1} parent=1 // pred_region
      _
    $region49: #{vit_forward.1} parent=1 // pred_fallthru
      _
    // Predicated region
    $region50: #{vit_forward.1} parent=1 // pred_check
      _
    $region51: #{vit_forward.1} parent=1 // pred_check_branch
      %52 = sbr.rel (0) target = $region53
    $region52: #{vit_forward.1} parent=1 // pred_region
      _
    $region53: #{vit_forward.1} parent=1 // pred_fallthru
      _
    // Predicated region
    $region54: #{vit_forward.1} parent=1 // pred_check
      _
    $region55: #{vit_forward.1} parent=1 // pred_check_branch
      %54 = sbr.rel (0) target = $region57
    $region56: #{vit_forward.1} parent=1 // pred_region
      _
    $region57: #{vit_forward.1} parent=1 // pred_fallthru
      _
    // Predicated region
    $region58: #{vit_forward.1} parent=1 // pred_check
      _
    $region59: #{vit_forward.1} parent=1 // pred_check_branch
      %56 = sbr.rel (0) target = $region61
    $region60: #{vit_forward.1} parent=1 // pred_region
      _
    $region61: #{vit_forward.1} parent=1 // pred_fallthru
      _
    // Predicated region
    $region62: #{vit_forward.1} parent=1 // pred_check
      _
    $region63: #{vit_forward.1} parent=1 // pred_check_branch
      %58 = sbr.rel (0) target = $region65
    $region64: #{vit_forward.1} parent=1 // pred_region
      _
    $region65: #{vit_forward.1} parent=1 // pred_fallthru
      _
    // Predicated region
    $region66: #{vit_forward.1} parent=1 // pred_check
      _
    $region67: #{vit_forward.1} parent=1 // pred_check_branch
      %60 = sbr.rel (0) target = $region69
    $region68: #{vit_forward.1} parent=1 // pred_region
      _
    $region69: #{vit_forward.1} parent=1 // pred_fallthru
      _
    // Predicated region
    $region70: #{vit_forward.1} parent=1 // pred_check
      _
    $region71: #{vit_forward.1} parent=1 // pred_check_branch
      %62 = sbr.rel (0) target = $region73
    $region72: #{vit_forward.1} parent=1 // pred_region
      _
    $region73: #{vit_forward.1} parent=1 // pred_fallthru
      _
    // Predicated region
    $region74: #{vit_forward.1} parent=1 // pred_check
      _
    $region75: #{vit_forward.1} parent=1 // pred_check_branch
      %64 = sbr.rel (0) target = $region77
    $region76: #{vit_forward.1} parent=1 // pred_region
      _
    $region77: #{vit_forward.1} parent=1 // pred_fallthru
      _
    // Predicated region
    $region78: #{vit_forward.1} parent=1 // pred_check
      _
    $region79: #{vit_forward.1} parent=1 // pred_check_branch
      %66 = sbr.rel (0) target = $region81
    $region80: #{vit_forward.1} parent=1 // pred_region
      _
    $region81: #{vit_forward.1} parent=1 // pred_fallthru
      _
    // Predicated region
    $region82: #{vit_forward.1} parent=1 // pred_check
      _
    $region83: #{vit_forward.1} parent=1 // pred_check_branch
      %68 = sbr.rel (0) target = $region85
    $region84: #{vit_forward.1} parent=1 // pred_region
      _
    $region85: #{vit_forward.1} parent=1 // pred_fallthru
      _
    %v69 = vld [vmem:[%s0] sm:$0xff]
    %v70 = vld [vmem:[%s0 + $0x8] sm:$0xff]
    %v71 = vld [vmem:[%s0 + $0x10] sm:$0xff]
    %v72 = vld [vmem:[%s0 + $0x18] sm:$0xff]
    %v73 = vld [vmem:[%s0 + $0x20] sm:$0xff]
    %v74 = vld [vmem:[%s0 + $0x28] sm:$0xff]
    %v75 = vld [vmem:[%s0 + $0x30] sm:$0xff]
    %v76 = vld [vmem:[%s0 + $0x38] sm:$0xff]
    %v77 = vld [vmem:[%s1] sm:$0xff]
    %v78 = vld [vmem:[%s1 + $0x8] sm:$0xff]
    %v79 = vld [vmem:[%s1 + $0x10] sm:$0xff]
    %v80 = vld [vmem:[%s1 + $0x18] sm:$0xff]
    %v81 = vld [vmem:[%s1 + $0x20] sm:$0xff]
    %v82 = vld [vmem:[%s1 + $0x28] sm:$0xff]
    %v83 = vld [vmem:[%s1 + $0x30] sm:$0xff]
    %v84 = vld [vmem:[%s1 + $0x38] sm:$0xff]
    %v85 = vld [vmem:[%s1 + $0x40] sm:$0xff]
    %v86 = vld [vmem:[%s1 + $0x48] sm:$0xff]
    %v87 = vld [vmem:[%s1 + $0x50] sm:$0xff]
    %v88 = vld [vmem:[%s1 + $0x58] sm:$0xff]
    %v89 = vld [vmem:[%s1 + $0x60] sm:$0xff]
    %v90 = vld [vmem:[%s1 + $0x68] sm:$0xff]
    %v91 = vld [vmem:[%s1 + $0x70] sm:$0xff]
    %v92 = vld [vmem:[%s1 + $0x78] sm:$0xff]
    %v93 = vld [vmem:[%s1 + $0x80] sm:$0xff]
    %v94 = vld [vmem:[%s1 + $0x88] sm:$0xff]
    %v95 = vld [vmem:[%s1 + $0x90] sm:$0xff]
    %v96 = vld [vmem:[%s1 + $0x98] sm:$0xff]
    %v97 = vld [vmem:[%s1 + $0xa0] sm:$0xff]
    %v98 = vld [vmem:[%s1 + $0xa8] sm:$0xff]
    %v99 = vld [vmem:[%s1 + $0xb0] sm:$0xff]
    %v100 = vld [vmem:[%s1 + $0xb8] sm:$0xff]
    %v101 = vld [vmem:[%s2] sm:$0x1]
    %v103 = vlaneseq
    %v104 = vshrl.u32 %v103, 7
    %v105 = vsub.s32 0, %v104
    %v106 = vrot.slane %v101, %v105
    %vm108 = vcmask 523264
    %v110 = vsel %vm108, %v70, 0
    %v113 = vsel %vm108, %v72, 0
    %v116 = vsel %vm108, %v74, 0
    %v119 = vsel %vm108, %v76, 0
    %121 = vmatprep.subr.mxu0 0.0
    %122 = vmatpush1.msra.mxu0 %v77
    %123 = vmatprep.subr.mxu0 0.0
    %124 = vmatpush1.msra.mxu0 %v78
    %125 = vmatprep.subr.mxu0 0.0
    %126 = vmatpush1.msra.mxu0 %v79
    %127 = vmatprep.subr.mxu0 0.0
    %128 = vmatpush1.msra.mxu0 %v80
    %129 = vmatprep.subr.mxu0 0.0
    %130 = vmatpush1.msra.mxu0 %v81
    %131 = vmatprep.subr.mxu0 0.0
    %132 = vmatpush1.msra.mxu0 %v82
    %133 = vmatprep.subr.mxu0 0.0
    %134 = vmatpush1.msra.mxu0 %v83
    %135 = vmatprep.subr.mxu0 0.0
    %136 = vmatpush1.msra.mxu0 %v84
    %137 = vmatprep.subr.mxu0 0.0
    %138 = vmatpush1.msra.mxu0 %v85
    %139 = vmatprep.subr.mxu0 0.0
    %140 = vmatpush1.msra.mxu0 %v86
    %141 = vmatprep.subr.mxu0 0.0
    %142 = vmatpush1.msra.mxu0 %v87
    %143 = vmatprep.subr.mxu0 0.0
    %144 = vmatpush1.msra.mxu0 %v88
    %145 = vmatprep.subr.mxu0 0.0
    %146 = vmatpush1.msra.mxu0 %v89
    %147 = vmatprep.subr.mxu0 0.0
    %148 = vmatpush1.msra.mxu0 %v90
    %149 = vmatprep.subr.mxu0 0.0
    %150 = vmatpush1.msra.mxu0 %v91
    %151 = vmatprep.subr.mxu0 0.0
    %152 = vmatpush1.msra.mxu0 %v92
    %153 = vmatprep.subr.mxu0 0.0
    %154 = vmatpush1.msra.mxu0 %v93
    %155 = vmatprep.subr.mxu0 0.0
    %156 = vmatpush1.msra.mxu0 %v94
    %157 = vmatprep.subr.mxu0 0.0
    %158 = vmatpush1.msra.mxu0 %v95
    %159 = vmatprep.subr.mxu0 0.0
    %160 = vmatpush1.msra.mxu0 %v96
    %161 = vmatprep.subr.mxu0 0.0
    %162 = vmatpush1.msra.mxu0 %v97
    %163 = vmatprep.subr.mxu0 0.0
    %164 = vmatpush1.msra.mxu0 %v98
    %165 = vmatprep.subr.mxu0 0.0
    %166 = vmatpush1.msra.mxu0 %v99
    %167 = vmatprep.subr.mxu0 0.0
    %168 = vmatpush1.msra.mxu0 %v100
    %169 = vmatprep.subr.mxu0 0.0
    %170 = vmatpush1.msra.mxu0 0.0
    %171 = vmatprep.subr.mxu0 0.0
    %172 = vmatpush1.msra.mxu0 0.0
    %173 = vmatprep.subr.mxu0 0.0
    %174 = vmatpush1.msra.mxu0 0.0
    %175 = vmatprep.subr.mxu0 0.0
    %176 = vmatpush1.msra.mxu0 0.0
    %177 = vmatprep.subr.mxu0 0.0
    %178 = vmatpush1.msra.mxu0 0.0
    %179 = vmatprep.subr.mxu0 0.0
    %180 = vmatpush1.msra.mxu0 0.0
    %181 = vmatprep.subr.mxu0 0.0
    %182 = vmatpush1.msra.mxu0 0.0
    %183 = vmatprep.subr.mxu0 0.0
    %184 = vmatpush1.msra.mxu0 0.0
    %185 = vmatprep.mubr.f32.mxu0 %v110
    %186 = vmatmul.mubr.f32.gmra.mrb[0].mxu0 %v69
    %v187 = vpop.f32.mrb[0].mxu0
    %v188 = vadd.f32 %v106, %v187
    %v189 = vpop.f32.mrb[0].mxu0
    %190 = vmatprep.mubr.f32.mxu0 %v113
    %191 = vmatmul.mubr.f32.gmra.mrb[0].mxu0 %v71
    %v192 = vpop.f32.mrb[0].mxu0
    %v193 = vadd.f32 %v106, %v192
    %v194 = vpop.f32.mrb[0].mxu0
    %195 = vmatprep.mubr.f32.mxu0 %v116
    %196 = vmatmul.mubr.f32.gmra.mrb[0].mxu0 %v73
    %v197 = vpop.f32.mrb[0].mxu0
    %v198 = vadd.f32 %v106, %v197
    %v199 = vpop.f32.mrb[0].mxu0
    %200 = vmatprep.mubr.f32.mxu0 %v119
    %201 = vmatmul.mubr.f32.gmra.mrb[0].mxu0 %v75
    %v202 = vpop.f32.mrb[0].mxu0
    %v203 = vadd.f32 %v106, %v202
    %v204 = vpop.f32.mrb[0].mxu0
    %205 = vdwg.mxu0
    %206 = vst.msk [vmem:[#allocation2] sm:$0xff] %vm108, 0.0
    %207 = vst.msk [vmem:[#allocation2 + $0x8] sm:$0xff] %vm108, 0.0
    %208 = vst.msk [vmem:[#allocation2 + $0x10] sm:$0xff] %vm108, 0.0
    %209 = vst.msk [vmem:[#allocation2 + $0x18] sm:$0xff] %vm108, 0.0
    %210 = vst.msk [vmem:[#allocation2 + $0x20] sm:$0xff] %vm108, 0.0
    %211 = vst.msk [vmem:[#allocation2 + $0x28] sm:$0xff] %vm108, 0.0
    %v212 = vld [vmem:[%s4] sm:$0xff]
    %v213 = vld [vmem:[%s4 + $0x8] sm:$0xff]
    %v214 = vadd.f32 %v188, %v212
    %v215 = vadd.f32 %v193, %v213
    %216 = vst.msk [vmem:[#allocation2] sm:$0xff] %vm108, %v214
    %217 = vst.msk [vmem:[#allocation2 + $0x8] sm:$0xff] %vm108, %v215
    %v218 = vld [vmem:[%s3] sm:$0x1]
    %vm219 = vcmask 516096
    %220 = vst.msk [vmem:[#allocation2 + $0x10] sm:$0x1] %vm219, %v218
    %v221 = vld [vmem:[%s4] sm:$0xff]
    %v222 = vld [vmem:[%s4 + $0x8] sm:$0xff]
    %v223 = vadd.f32 %v198, %v221
    %v224 = vadd.f32 %v203, %v222
    %225 = vst.msk [vmem:[#allocation2 + $0x18] sm:$0xff] %vm108, %v223
    %226 = vst.msk [vmem:[#allocation2 + $0x20] sm:$0xff] %vm108, %v224
    %v227 = vld [vmem:[%s3] sm:$0x1]
    %228 = vst.msk [vmem:[#allocation2 + $0x28] sm:$0x1] %vm219, %v227
    loop: start=0, step=1, limit=6
    $region86: #{vit_forward.1} parent=1 // loop_pre_header
      _
    $region87: #{vit_forward.1} parent=1 // loop_header
      %s230 = sphi 0, %s234
      %p231 = scmp.ge.s32.totalorder %s230, 6
    $region88: #{vit_forward.1} parent=1 // loop_header_branch
      %233 = sbr.rel (%p231) target = $region92
    $region89: #{vit_forward.1} parent=1 // loop_body
      %v235 = vld [vmem:[#allocation2] sm:$0xff]
      %v236 = vld [vmem:[#allocation2 + $0x8] sm:$0xff]
      %v237 = vld [vmem:[#allocation2 + $0x10] sm:$0xff]
      %v238 = vld [vmem:[#allocation2 + $0x18] sm:$0xff]
      %v239 = vld [vmem:[#allocation2 + $0x20] sm:$0xff]
      %v240 = vld [vmem:[#allocation2 + $0x28] sm:$0xff]
      %v241 = vld [vmem:[%s5] sm:$0xff]
      %v242 = vld [vmem:[%s5 + $0x8] sm:$0xff]
      %v243 = vld [vmem:[%s5 + $0x10] sm:$0xff]
      %v244 = vld [vmem:[%s5 + $0x18] sm:$0xff]
      %v245 = vld [vmem:[%s5 + $0x20] sm:$0xff]
      %v246 = vld [vmem:[%s5 + $0x28] sm:$0xff]
      %v247 = vld [vmem:[%s5 + $0x30] sm:$0xff]
      %v248 = vld [vmem:[%s5 + $0x38] sm:$0xff]
      %v249 = vld [vmem:[%s6] sm:$0xf]
      %s250 = smul.u32 %s230, 16
      %s251 = smul.addr %s250, 8
      %s252 = scalar_lea.vmem %s7, %s251
      %v253 = vld [vmem:[%s252] sm:$0xff]
      %v254 = vld [vmem:[%s252 + $0x8] sm:$0xff]
      %v255 = vld [vmem:[%s252 + $0x10] sm:$0xff]
      %v256 = vld [vmem:[%s252 + $0x18] sm:$0xff]
      %v257 = vld [vmem:[%s252 + $0x20] sm:$0xff]
      %v258 = vld [vmem:[%s252 + $0x28] sm:$0xff]
      %v259 = vld [vmem:[%s252 + $0x30] sm:$0xff]
      %v260 = vld [vmem:[%s252 + $0x38] sm:$0xff]
      %v261 = vld [vmem:[%s252 + $0x40] sm:$0xff]
      %v262 = vld [vmem:[%s252 + $0x48] sm:$0xff]
      %v263 = vld [vmem:[%s252 + $0x50] sm:$0xff]
      %v264 = vld [vmem:[%s252 + $0x58] sm:$0xff]
      %v265 = vld [vmem:[%s252 + $0x60] sm:$0xff]
      %v266 = vld [vmem:[%s252 + $0x68] sm:$0xff]
      %v267 = vld [vmem:[%s252 + $0x70] sm:$0xff]
      %v268 = vld [vmem:[%s252 + $0x78] sm:$0xff]
      %s269 = smul.u32 %s230, 2
      %s270 = scalar_lea.vmem %s8, %s269
      %v271 = vld [vmem:[%s270] sm:$0x3]
      %v273 = vlaneseq
      %v274 = vshrl.u32 %v273, 7
      %v275 = vsub.s32 0, %v274
      %v276 = vrot.slane %v271, %v275
      %v277 = vlaneseq
      %v278 = vshrl.u32 %v277, 7
      %v279 = vsub.s32 1, %v278
      %v280 = vrot.slane %v271, %v279
      %v284 = vsel %vm108, %v235, 0
      %v287 = vsel %vm108, %v236, 0
      %v290 = vsel %vm108, %v237, 0
      %v293 = vsel %vm108, %v238, 0
      %v296 = vsel %vm108, %v239, 0
      %v299 = vsel %vm108, %v240, 0
      %301 = vmatprep.subr.mxu0 %v254
      %302 = vmatpush1.msra.mxu0 %v253
      %303 = vmatprep.subr.mxu0 %v256
      %304 = vmatpush1.msra.mxu0 %v255
      %305 = vmatprep.subr.mxu0 %v258
      %306 = vmatpush1.msra.mxu0 %v257
      %307 = vmatprep.subr.mxu0 %v260
      %308 = vmatpush1.msra.mxu0 %v259
      %309 = vmatprep.subr.mxu0 %v262
      %310 = vmatpush1.msra.mxu0 %v261
      %311 = vmatprep.subr.mxu0 %v264
      %312 = vmatpush1.msra.mxu0 %v263
      %313 = vmatprep.subr.mxu0 %v266
      %314 = vmatpush1.msra.mxu0 %v265
      %315 = vmatprep.subr.mxu0 %v268
      %316 = vmatpush1.msra.mxu0 %v267
      %317 = vmatprep.subr.mxu0 0.0
      %318 = vmatpush1.msra.mxu0 0.0
      %319 = vmatprep.subr.mxu0 0.0
      %320 = vmatpush1.msra.mxu0 0.0
      %321 = vmatprep.subr.mxu0 0.0
      %322 = vmatpush1.msra.mxu0 0.0
      %323 = vmatprep.subr.mxu0 0.0
      %324 = vmatpush1.msra.mxu0 0.0
      %325 = vmatprep.subr.mxu0 0.0
      %326 = vmatpush1.msra.mxu0 0.0
      %327 = vmatprep.subr.mxu0 0.0
      %328 = vmatpush1.msra.mxu0 0.0
      %329 = vmatprep.subr.mxu0 0.0
      %330 = vmatpush1.msra.mxu0 0.0
      %331 = vmatprep.subr.mxu0 0.0
      %332 = vmatpush1.msra.mxu0 0.0
      %333 = vmatprep.subr.mxu0 0.0
      %334 = vmatpush1.msra.mxu0 0.0
      %335 = vmatprep.subr.mxu0 0.0
      %336 = vmatpush1.msra.mxu0 0.0
      %337 = vmatprep.subr.mxu0 0.0
      %338 = vmatpush1.msra.mxu0 0.0
      %339 = vmatprep.subr.mxu0 0.0
      %340 = vmatpush1.msra.mxu0 0.0
      %341 = vmatprep.subr.mxu0 0.0
      %342 = vmatpush1.msra.mxu0 0.0
      %343 = vmatprep.subr.mxu0 0.0
      %344 = vmatpush1.msra.mxu0 0.0
      %345 = vmatprep.subr.mxu0 0.0
      %346 = vmatpush1.msra.mxu0 0.0
      %347 = vmatprep.subr.mxu0 0.0
      %348 = vmatpush1.msra.mxu0 0.0
      %349 = vmatprep.subr.mxu0 0.0
      %350 = vmatpush1.msra.mxu0 0.0
      %351 = vmatprep.subr.mxu0 0.0
      %352 = vmatpush1.msra.mxu0 0.0
      %353 = vmatprep.subr.mxu0 0.0
      %354 = vmatpush1.msra.mxu0 0.0
      %355 = vmatprep.subr.mxu0 0.0
      %356 = vmatpush1.msra.mxu0 0.0
      %357 = vmatprep.subr.mxu0 0.0
      %358 = vmatpush1.msra.mxu0 0.0
      %359 = vmatprep.subr.mxu0 0.0
      %360 = vmatpush1.msra.mxu0 0.0
      %361 = vmatprep.subr.mxu0 0.0
      %362 = vmatpush1.msra.mxu0 0.0
      %363 = vmatprep.subr.mxu0 0.0
      %364 = vmatpush1.msra.mxu0 0.0
      %365 = vmatprep.mubr.f32.mxu0 0.0
      %366 = vmatmul.mubr.f32.gmra.mrb[0].mxu0 %v284
      %v367 = vpop.f32.mrb[0].mxu0
      %v368 = vadd.f32 %v276, %v367
      %v369 = vpop.f32.mrb[0].mxu0
      %v370 = vadd.f32 %v280, %v369
      %371 = vmatprep.mubr.f32.mxu0 0.0
      %372 = vmatmul.mubr.f32.gmra.mrb[0].mxu0 %v287
      %v373 = vpop.f32.mrb[0].mxu0
      %v374 = vadd.f32 %v276, %v373
      %v375 = vpop.f32.mrb[0].mxu0
      %v376 = vadd.f32 %v280, %v375
      %377 = vmatprep.mubr.f32.mxu0 0.0
      %378 = vmatmul.mubr.f32.gmra.mrb[0].mxu0 %v290
      %v379 = vpop.f32.mrb[0].mxu0
      %v380 = vadd.f32 %v276, %v379
      %v381 = vpop.f32.mrb[0].mxu0
      %v382 = vadd.f32 %v280, %v381
      %383 = vmatprep.mubr.f32.mxu0 0.0
      %384 = vmatmul.mubr.f32.gmra.mrb[0].mxu0 %v293
      %v385 = vpop.f32.mrb[0].mxu0
      %v386 = vadd.f32 %v276, %v385
      %v387 = vpop.f32.mrb[0].mxu0
      %v388 = vadd.f32 %v280, %v387
      %389 = vmatprep.mubr.f32.mxu0 0.0
      %390 = vmatmul.mubr.f32.gmra.mrb[0].mxu0 %v296
      %v391 = vpop.f32.mrb[0].mxu0
      %v392 = vadd.f32 %v276, %v391
      %v393 = vpop.f32.mrb[0].mxu0
      %v394 = vadd.f32 %v280, %v393
      %395 = vmatprep.mubr.f32.mxu0 0.0
      %396 = vmatmul.mubr.f32.gmra.mrb[0].mxu0 %v299
      %v397 = vpop.f32.mrb[0].mxu0
      %v398 = vadd.f32 %v276, %v397
      %v399 = vpop.f32.mrb[0].mxu0
      %v400 = vadd.f32 %v280, %v399
      %401 = vdwg.mxu0
      %v402 = vmul.f32 %v368, 0.25
      %v403 = vmul.f32 %v374, 0.25
      %v404 = vmul.f32 %v380, 0.25
      %v405 = vmul.f32 %v386, 0.25
      %v406 = vmul.f32 %v392, 0.25
      %v407 = vmul.f32 %v398, 0.25
      %414 = vrot.lane.b32.xlu0 %v368, 64
      %v415 = vpop.permute.xlu0 %414
      %416 = vrot.lane.b32.xlu0 %v374, 64
      %v417 = vpop.permute.xlu0 %416
      %418 = vrot.lane.b32.xlu0 %v380, 64
      %v419 = vpop.permute.xlu0 %418
      %420 = vrot.lane.b32.xlu0 %v386, 64
      %v421 = vpop.permute.xlu0 %420
      %422 = vrot.lane.b32.xlu0 %v392, 64
      %v423 = vpop.permute.xlu0 %422
      %424 = vrot.lane.b32.xlu0 %v398, 64
      %v425 = vpop.permute.xlu0 %424
      %v432 = vmul.f32 %v402, %v415
      %v433 = vmul.f32 %v403, %v417
      %v434 = vmul.f32 %v404, %v419
      %v435 = vmul.f32 %v402, %v421
      %v436 = vmul.f32 %v403, %v423
      %v437 = vmul.f32 %v404, %v425
      %v439 = vsel %vm108, %v432, 0
      %v442 = vsel %vm108, %v433, 0
      %v445 = vsel %vm108, %v434, 0
      %v448 = vsel %vm108, %v435, 0
      %v451 = vsel %vm108, %v436, 0
      %v454 = vsel %vm108, %v437, 0
      %456 = vmatprep.subr.mxu0 0.0
      %457 = vmatpush1.msra.mxu0 %v241
      %458 = vmatprep.subr.mxu0 0.0
      %459 = vmatpush1.msra.mxu0 %v242
      %460 = vmatprep.subr.mxu0 0.0
      %461 = vmatpush1.msra.mxu0 %v243
      %462 = vmatprep.subr.mxu0 0.0
      %463 = vmatpush1.msra.mxu0 %v244
      %464 = vmatprep.subr.mxu0 0.0
      %465 = vmatpush1.msra.mxu0 %v245
      %466 = vmatprep.subr.mxu0 0.0
      %467 = vmatpush1.msra.mxu0 %v246
      %468 = vmatprep.subr.mxu0 0.0
      %469 = vmatpush1.msra.mxu0 %v247
      %470 = vmatprep.subr.mxu0 0.0
      %471 = vmatpush1.msra.mxu0 %v248
      %472 = vmatprep.subr.mxu0 0.0
      %473 = vmatpush1.msra.mxu0 0.0
      %474 = vmatprep.subr.mxu0 0.0
      %475 = vmatpush1.msra.mxu0 0.0
      %476 = vmatprep.subr.mxu0 0.0
      %477 = vmatpush1.msra.mxu0 0.0
      %478 = vmatprep.subr.mxu0 0.0
      %479 = vmatpush1.msra.mxu0 0.0
      %480 = vmatprep.subr.mxu0 0.0
      %481 = vmatpush1.msra.mxu0 0.0
      %482 = vmatprep.subr.mxu0 0.0
      %483 = vmatpush1.msra.mxu0 0.0
      %484 = vmatprep.subr.mxu0 0.0
      %485 = vmatpush1.msra.mxu0 0.0
      %486 = vmatprep.subr.mxu0 0.0
      %487 = vmatpush1.msra.mxu0 0.0
      %488 = vmatprep.subr.mxu0 0.0
      %489 = vmatpush1.msra.mxu0 0.0
      %490 = vmatprep.subr.mxu0 0.0
      %491 = vmatpush1.msra.mxu0 0.0
      %492 = vmatprep.subr.mxu0 0.0
      %493 = vmatpush1.msra.mxu0 0.0
      %494 = vmatprep.subr.mxu0 0.0
      %495 = vmatpush1.msra.mxu0 0.0
      %496 = vmatprep.subr.mxu0 0.0
      %497 = vmatpush1.msra.mxu0 0.0
      %498 = vmatprep.subr.mxu0 0.0
      %499 = vmatpush1.msra.mxu0 0.0
      %500 = vmatprep.subr.mxu0 0.0
      %501 = vmatpush1.msra.mxu0 0.0
      %502 = vmatprep.subr.mxu0 0.0
      %503 = vmatpush1.msra.mxu0 0.0
      %504 = vmatprep.subr.mxu0 0.0
      %505 = vmatpush1.msra.mxu0 0.0
      %506 = vmatprep.subr.mxu0 0.0
      %507 = vmatpush1.msra.mxu0 0.0
      %508 = vmatprep.subr.mxu0 0.0
      %509 = vmatpush1.msra.mxu0 0.0
      %510 = vmatprep.subr.mxu0 0.0
      %511 = vmatpush1.msra.mxu0 0.0
      %512 = vmatprep.subr.mxu0 0.0
      %513 = vmatpush1.msra.mxu0 0.0
      %514 = vmatprep.subr.mxu0 0.0
      %515 = vmatpush1.msra.mxu0 0.0
      %516 = vmatprep.subr.mxu0 0.0
      %517 = vmatpush1.msra.mxu0 0.0
      %518 = vmatprep.subr.mxu0 0.0
      %519 = vmatpush1.msra.mxu0 0.0
      %520 = vmatprep.mubr.f32.mxu0 0.0
      %521 = vmatmul.mubr.f32.gmra.mrb[0].mxu0 %v439
      %v522 = vpop.f32.mrb[0].mxu0
      %v523 = vadd.f32 0.0, %v522
      %v524 = vpop.f32.mrb[0].mxu0
      %525 = vmatprep.mubr.f32.mxu0 0.0
      %526 = vmatmul.mubr.f32.gmra.mrb[0].mxu0 %v442
      %v527 = vpop.f32.mrb[0].mxu0
      %v528 = vadd.f32 0.0, %v527
      %v529 = vpop.f32.mrb[0].mxu0
      %530 = vmatprep.mubr.f32.mxu0 0.0
      %531 = vmatmul.mubr.f32.gmra.mrb[0].mxu0 %v445
      %v532 = vpop.f32.mrb[0].mxu0
      %v533 = vadd.f32 0.0, %v532
      %v534 = vpop.f32.mrb[0].mxu0
      %535 = vmatprep.mubr.f32.mxu0 0.0
      %536 = vmatmul.mubr.f32.gmra.mrb[0].mxu0 %v448
      %v537 = vpop.f32.mrb[0].mxu0
      %v538 = vadd.f32 0.0, %v537
      %v539 = vpop.f32.mrb[0].mxu0
      %540 = vmatprep.mubr.f32.mxu0 0.0
      %541 = vmatmul.mubr.f32.gmra.mrb[0].mxu0 %v451
      %v542 = vpop.f32.mrb[0].mxu0
      %v543 = vadd.f32 0.0, %v542
      %v544 = vpop.f32.mrb[0].mxu0
      %545 = vmatprep.mubr.f32.mxu0 0.0
      %546 = vmatmul.mubr.f32.gmra.mrb[0].mxu0 %v454
      %v547 = vpop.f32.mrb[0].mxu0
      %v548 = vadd.f32 0.0, %v547
      %v549 = vpop.f32.mrb[0].mxu0
      %550 = vdwg.mxu0
      %v551 = vmax.f32 %v523, %v538
      %v552 = vmax.f32 %v528, %v543
      %v553 = vmax.f32 %v533, %v548
      %v554 = vsub.f32 %v523, %v551
      %v555 = vsub.f32 %v528, %v552
      %v556 = vsub.f32 %v533, %v553
      %v557 = vmul.f32 %v554, 1.442695
      %v558 = vpow.pop %v557
      %v559 = vmul.f32 %v555, 1.442695
      %v560 = vpow.pop %v559
      %v561 = vmul.f32 %v556, 1.442695
      %v562 = vpow.pop %v561
      %v563 = vsub.f32 %v538, %v551
      %v564 = vsub.f32 %v543, %v552
      %v565 = vsub.f32 %v548, %v553
      %v566 = vmul.f32 %v563, 1.442695
      %v567 = vpow.pop %v566
      %v568 = vmul.f32 %v564, 1.442695
      %v569 = vpow.pop %v568
      %v570 = vmul.f32 %v565, 1.442695
      %v571 = vpow.pop %v570
      %v572 = vadd.f32 %v558, %v567
      %v573 = vadd.f32 %v560, %v569
      %v574 = vadd.f32 %v562, %v571
      %v575 = vrcp.pop %v572
      %v576 = vrcp.pop %v573
      %v577 = vrcp.pop %v574
      %v578 = vmul.f32 %v558, %v575
      %v579 = vmul.f32 %v560, %v576
      %v580 = vmul.f32 %v562, %v577
      %v581 = vmul.f32 %v567, %v575
      %v582 = vmul.f32 %v569, %v576
      %v583 = vmul.f32 %v571, %v577
      %vm584 = vcmask 31744
      %v586 = vsel %vm584, %v578, 0
      %v589 = vsel %vm584, %v579, 0
      %v592 = vsel %vm584, %v580, 0
      %v595 = vsel %vm584, %v581, 0
      %v598 = vsel %vm584, %v582, 0
      %v601 = vsel %vm584, %v583, 0
      %vm603 = vcmask 1043456
      %v605 = vsel %vm603, %v249, 0
      %607 = vmatprep.subr.mxu0 0.0
      %608 = vmatpush1.msra.mxu0 %v605
      %609 = vmatprep.subr.mxu0 0.0
      %610 = vmatpush1.msra.mxu0 0.0
      %611 = vmatprep.subr.mxu0 0.0
      %612 = vmatpush1.msra.mxu0 0.0
      %613 = vmatprep.subr.mxu0 0.0
      %614 = vmatpush1.msra.mxu0 0.0
      %615 = vmatprep.subr.mxu0 0.0
      %616 = vmatpush1.msra.mxu0 0.0
      %617 = vmatprep.subr.mxu0 0.0
      %618 = vmatpush1.msra.mxu0 0.0
      %619 = vmatprep.subr.mxu0 0.0
      %620 = vmatpush1.msra.mxu0 0.0
      %621 = vmatprep.subr.mxu0 0.0
      %622 = vmatpush1.msra.mxu0 0.0
      %623 = vmatprep.subr.mxu0 0.0
      %624 = vmatpush1.msra.mxu0 0.0
      %625 = vmatprep.subr.mxu0 0.0
      %626 = vmatpush1.msra.mxu0 0.0
      %627 = vmatprep.subr.mxu0 0.0
      %628 = vmatpush1.msra.mxu0 0.0
      %629 = vmatprep.subr.mxu0 0.0
      %630 = vmatpush1.msra.mxu0 0.0
      %631 = vmatprep.subr.mxu0 0.0
      %632 = vmatpush1.msra.mxu0 0.0
      %633 = vmatprep.subr.mxu0 0.0
      %634 = vmatpush1.msra.mxu0 0.0
      %635 = vmatprep.subr.mxu0 0.0
      %636 = vmatpush1.msra.mxu0 0.0
      %637 = vmatprep.subr.mxu0 0.0
      %638 = vmatpush1.msra.mxu0 0.0
      %639 = vmatprep.subr.mxu0 0.0
      %640 = vmatpush1.msra.mxu0 0.0
      %641 = vmatprep.subr.mxu0 0.0
      %642 = vmatpush1.msra.mxu0 0.0
      %643 = vmatprep.subr.mxu0 0.0
      %644 = vmatpush1.msra.mxu0 0.0
      %645 = vmatprep.subr.mxu0 0.0
      %646 = vmatpush1.msra.mxu0 0.0
      %647 = vmatprep.subr.mxu0 0.0
      %648 = vmatpush1.msra.mxu0 0.0
      %649 = vmatprep.subr.mxu0 0.0
      %650 = vmatpush1.msra.mxu0 0.0
      %651 = vmatprep.subr.mxu0 0.0
      %652 = vmatpush1.msra.mxu0 0.0
      %653 = vmatprep.subr.mxu0 0.0
      %654 = vmatpush1.msra.mxu0 0.0
      %655 = vmatprep.subr.mxu0 0.0
      %656 = vmatpush1.msra.mxu0 0.0
      %657 = vmatprep.subr.mxu0 0.0
      %658 = vmatpush1.msra.mxu0 0.0
      %659 = vmatprep.subr.mxu0 0.0
      %660 = vmatpush1.msra.mxu0 0.0
      %661 = vmatprep.subr.mxu0 0.0
      %662 = vmatpush1.msra.mxu0 0.0
      %663 = vmatprep.subr.mxu0 0.0
      %664 = vmatpush1.msra.mxu0 0.0
      %665 = vmatprep.subr.mxu0 0.0
      %666 = vmatpush1.msra.mxu0 0.0
      %667 = vmatprep.subr.mxu0 0.0
      %668 = vmatpush1.msra.mxu0 0.0
      %669 = vmatprep.subr.mxu0 0.0
      %670 = vmatpush1.msra.mxu0 0.0
      %671 = vmatprep.mubr.f32.mxu0 0.0
      %672 = vmatmul.mubr.f32.gmra.mrb[0].mxu0 %v586
      %v673 = vpop.f32.mrb[0].mxu0
      %v674 = vadd.f32 0.0, %v673
      %v675 = vpop.f32.mrb[0].mxu0
      %676 = vmatprep.mubr.f32.mxu0 0.0
      %677 = vmatmul.mubr.f32.gmra.mrb[0].mxu0 %v589
      %v678 = vpop.f32.mrb[0].mxu0
      %v679 = vadd.f32 0.0, %v678
      %v680 = vpop.f32.mrb[0].mxu0
      %681 = vmatprep.mubr.f32.mxu0 0.0
      %682 = vmatmul.mubr.f32.gmra.mrb[0].mxu0 %v592
      %v683 = vpop.f32.mrb[0].mxu0
      %v684 = vadd.f32 0.0, %v683
      %v685 = vpop.f32.mrb[0].mxu0
      %686 = vmatprep.mubr.f32.mxu0 0.0
      %687 = vmatmul.mubr.f32.gmra.mrb[0].mxu0 %v595
      %v688 = vpop.f32.mrb[0].mxu0
      %v689 = vadd.f32 0.0, %v688
      %v690 = vpop.f32.mrb[0].mxu0
      %691 = vmatprep.mubr.f32.mxu0 0.0
      %692 = vmatmul.mubr.f32.gmra.mrb[0].mxu0 %v598
      %v693 = vpop.f32.mrb[0].mxu0
      %v694 = vadd.f32 0.0, %v693
      %v695 = vpop.f32.mrb[0].mxu0
      %696 = vmatprep.mubr.f32.mxu0 0.0
      %697 = vmatmul.mubr.f32.gmra.mrb[0].mxu0 %v601
      %v698 = vpop.f32.mrb[0].mxu0
      %v699 = vadd.f32 0.0, %v698
      %v700 = vpop.f32.mrb[0].mxu0
      %701 = vdwg.mxu0
      %v702 = vmul.f32 %v674, %v370
      %v703 = vmul.f32 %v679, %v376
      %v704 = vmul.f32 %v684, %v382
      %v705 = vmul.f32 %v689, %v388
      %v706 = vmul.f32 %v694, %v394
      %v707 = vmul.f32 %v699, %v400
      %v708 = vadd.f32 %v702, %v705
      %v709 = vadd.f32 %v703, %v706
      %v710 = vadd.f32 %v704, %v707
      %v711 = vmul.f32 %v405, %v415
      %v712 = vmul.f32 %v406, %v417
      %v713 = vmul.f32 %v407, %v419
      %v714 = vmul.f32 %v405, %v421
      %v715 = vmul.f32 %v406, %v423
      %v716 = vmul.f32 %v407, %v425
      %v718 = vsel %vm108, %v711, 0
      %v721 = vsel %vm108, %v712, 0
      %v724 = vsel %vm108, %v713, 0
      %v727 = vsel %vm108, %v714, 0
      %v730 = vsel %vm108, %v715, 0
      %v733 = vsel %vm108, %v716, 0
      %735 = vmatprep.subr.mxu0 0.0
      %736 = vmatpush1.msra.mxu0 %v241
      %737 = vmatprep.subr.mxu0 0.0
      %738 = vmatpush1.msra.mxu0 %v242
      %739 = vmatprep.subr.mxu0 0.0
      %740 = vmatpush1.msra.mxu0 %v243
      %741 = vmatprep.subr.mxu0 0.0
      %742 = vmatpush1.msra.mxu0 %v244
      %743 = vmatprep.subr.mxu0 0.0
      %744 = vmatpush1.msra.mxu0 %v245
      %745 = vmatprep.subr.mxu0 0.0
      %746 = vmatpush1.msra.mxu0 %v246
      %747 = vmatprep.subr.mxu0 0.0
      %748 = vmatpush1.msra.mxu0 %v247
      %749 = vmatprep.subr.mxu0 0.0
      %750 = vmatpush1.msra.mxu0 %v248
      %751 = vmatprep.subr.mxu0 0.0
      %752 = vmatpush1.msra.mxu0 0.0
      %753 = vmatprep.subr.mxu0 0.0
      %754 = vmatpush1.msra.mxu0 0.0
      %755 = vmatprep.subr.mxu0 0.0
      %756 = vmatpush1.msra.mxu0 0.0
      %757 = vmatprep.subr.mxu0 0.0
      %758 = vmatpush1.msra.mxu0 0.0
      %759 = vmatprep.subr.mxu0 0.0
      %760 = vmatpush1.msra.mxu0 0.0
      %761 = vmatprep.subr.mxu0 0.0
      %762 = vmatpush1.msra.mxu0 0.0
      %763 = vmatprep.subr.mxu0 0.0
      %764 = vmatpush1.msra.mxu0 0.0
      %765 = vmatprep.subr.mxu0 0.0
      %766 = vmatpush1.msra.mxu0 0.0
      %767 = vmatprep.subr.mxu0 0.0
      %768 = vmatpush1.msra.mxu0 0.0
      %769 = vmatprep.subr.mxu0 0.0
      %770 = vmatpush1.msra.mxu0 0.0
      %771 = vmatprep.subr.mxu0 0.0
      %772 = vmatpush1.msra.mxu0 0.0
      %773 = vmatprep.subr.mxu0 0.0
      %774 = vmatpush1.msra.mxu0 0.0
      %775 = vmatprep.subr.mxu0 0.0
      %776 = vmatpush1.msra.mxu0 0.0
      %777 = vmatprep.subr.mxu0 0.0
      %778 = vmatpush1.msra.mxu0 0.0
      %779 = vmatprep.subr.mxu0 0.0
      %780 = vmatpush1.msra.mxu0 0.0
      %781 = vmatprep.subr.mxu0 0.0
      %782 = vmatpush1.msra.mxu0 0.0
      %783 = vmatprep.subr.mxu0 0.0
      %784 = vmatpush1.msra.mxu0 0.0
      %785 = vmatprep.subr.mxu0 0.0
      %786 = vmatpush1.msra.mxu0 0.0
      %787 = vmatprep.subr.mxu0 0.0
      %788 = vmatpush1.msra.mxu0 0.0
      %789 = vmatprep.subr.mxu0 0.0
      %790 = vmatpush1.msra.mxu0 0.0
      %791 = vmatprep.subr.mxu0 0.0
      %792 = vmatpush1.msra.mxu0 0.0
      %793 = vmatprep.subr.mxu0 0.0
      %794 = vmatpush1.msra.mxu0 0.0
      %795 = vmatprep.subr.mxu0 0.0
      %796 = vmatpush1.msra.mxu0 0.0
      %797 = vmatprep.subr.mxu0 0.0
      %798 = vmatpush1.msra.mxu0 0.0
      %799 = vmatprep.mubr.f32.mxu0 0.0
      %800 = vmatmul.mubr.f32.gmra.mrb[0].mxu0 %v718
      %v801 = vpop.f32.mrb[0].mxu0
      %v802 = vadd.f32 0.0, %v801
      %v803 = vpop.f32.mrb[0].mxu0
      %804 = vmatprep.mubr.f32.mxu0 0.0
      %805 = vmatmul.mubr.f32.gmra.mrb[0].mxu0 %v721
      %v806 = vpop.f32.mrb[0].mxu0
      %v807 = vadd.f32 0.0, %v806
      %v808 = vpop.f32.mrb[0].mxu0
      %809 = vmatprep.mubr.f32.mxu0 0.0
      %810 = vmatmul.mubr.f32.gmra.mrb[0].mxu0 %v724
      %v811 = vpop.f32.mrb[0].mxu0
      %v812 = vadd.f32 0.0, %v811
      %v813 = vpop.f32.mrb[0].mxu0
      %814 = vmatprep.mubr.f32.mxu0 0.0
      %815 = vmatmul.mubr.f32.gmra.mrb[0].mxu0 %v727
      %v816 = vpop.f32.mrb[0].mxu0
      %v817 = vadd.f32 0.0, %v816
      %v818 = vpop.f32.mrb[0].mxu0
      %819 = vmatprep.mubr.f32.mxu0 0.0
      %820 = vmatmul.mubr.f32.gmra.mrb[0].mxu0 %v730
      %v821 = vpop.f32.mrb[0].mxu0
      %v822 = vadd.f32 0.0, %v821
      %v823 = vpop.f32.mrb[0].mxu0
      %824 = vmatprep.mubr.f32.mxu0 0.0
      %825 = vmatmul.mubr.f32.gmra.mrb[0].mxu0 %v733
      %v826 = vpop.f32.mrb[0].mxu0
      %v827 = vadd.f32 0.0, %v826
      %v828 = vpop.f32.mrb[0].mxu0
      %829 = vdwg.mxu0
      %v830 = vmax.f32 %v802, %v817
      %v831 = vmax.f32 %v807, %v822
      %v832 = vmax.f32 %v812, %v827
      %v833 = vsub.f32 %v802, %v830
      %v834 = vsub.f32 %v807, %v831
      %v835 = vsub.f32 %v812, %v832
      %v836 = vmul.f32 %v833, 1.442695
      %v837 = vpow.pop %v836
      %v838 = vmul.f32 %v834, 1.442695
      %v839 = vpow.pop %v838
      %v840 = vmul.f32 %v835, 1.442695
      %v841 = vpow.pop %v840
      %v842 = vsub.f32 %v817, %v830
      %v843 = vsub.f32 %v822, %v831
      %v844 = vsub.f32 %v827, %v832
      %v845 = vmul.f32 %v842, 1.442695
      %v846 = vpow.pop %v845
      %v847 = vmul.f32 %v843, 1.442695
      %v848 = vpow.pop %v847
      %v849 = vmul.f32 %v844, 1.442695
      %v850 = vpow.pop %v849
      %v851 = vadd.f32 %v837, %v846
      %v852 = vadd.f32 %v839, %v848
      %v853 = vadd.f32 %v841, %v850
      %v854 = vrcp.pop %v851
      %v855 = vrcp.pop %v852
      %v856 = vrcp.pop %v853
      %v857 = vmul.f32 %v837, %v854
      %v858 = vmul.f32 %v839, %v855
      %v859 = vmul.f32 %v841, %v856
      %v860 = vmul.f32 %v846, %v854
      %v861 = vmul.f32 %v848, %v855
      %v862 = vmul.f32 %v850, %v856
      %v864 = vsel %vm584, %v857, 0
      %v867 = vsel %vm584, %v858, 0
      %v870 = vsel %vm584, %v859, 0
      %v873 = vsel %vm584, %v860, 0
      %v876 = vsel %vm584, %v861, 0
      %v879 = vsel %vm584, %v862, 0
      %881 = vmatprep.subr.mxu0 0.0
      %882 = vmatpush1.msra.mxu0 %v605
      %883 = vmatprep.subr.mxu0 0.0
      %884 = vmatpush1.msra.mxu0 0.0
      %885 = vmatprep.subr.mxu0 0.0
      %886 = vmatpush1.msra.mxu0 0.0
      %887 = vmatprep.subr.mxu0 0.0
      %888 = vmatpush1.msra.mxu0 0.0
      %889 = vmatprep.subr.mxu0 0.0
      %890 = vmatpush1.msra.mxu0 0.0
      %891 = vmatprep.subr.mxu0 0.0
      %892 = vmatpush1.msra.mxu0 0.0
      %893 = vmatprep.subr.mxu0 0.0
      %894 = vmatpush1.msra.mxu0 0.0
      %895 = vmatprep.subr.mxu0 0.0
      %896 = vmatpush1.msra.mxu0 0.0
      %897 = vmatprep.subr.mxu0 0.0
      %898 = vmatpush1.msra.mxu0 0.0
      %899 = vmatprep.subr.mxu0 0.0
      %900 = vmatpush1.msra.mxu0 0.0
      %901 = vmatprep.subr.mxu0 0.0
      %902 = vmatpush1.msra.mxu0 0.0
      %903 = vmatprep.subr.mxu0 0.0
      %904 = vmatpush1.msra.mxu0 0.0
      %905 = vmatprep.subr.mxu0 0.0
      %906 = vmatpush1.msra.mxu0 0.0
      %907 = vmatprep.subr.mxu0 0.0
      %908 = vmatpush1.msra.mxu0 0.0
      %909 = vmatprep.subr.mxu0 0.0
      %910 = vmatpush1.msra.mxu0 0.0
      %911 = vmatprep.subr.mxu0 0.0
      %912 = vmatpush1.msra.mxu0 0.0
      %913 = vmatprep.subr.mxu0 0.0
      %914 = vmatpush1.msra.mxu0 0.0
      %915 = vmatprep.subr.mxu0 0.0
      %916 = vmatpush1.msra.mxu0 0.0
      %917 = vmatprep.subr.mxu0 0.0
      %918 = vmatpush1.msra.mxu0 0.0
      %919 = vmatprep.subr.mxu0 0.0
      %920 = vmatpush1.msra.mxu0 0.0
      %921 = vmatprep.subr.mxu0 0.0
      %922 = vmatpush1.msra.mxu0 0.0
      %923 = vmatprep.subr.mxu0 0.0
      %924 = vmatpush1.msra.mxu0 0.0
      %925 = vmatprep.subr.mxu0 0.0
      %926 = vmatpush1.msra.mxu0 0.0
      %927 = vmatprep.subr.mxu0 0.0
      %928 = vmatpush1.msra.mxu0 0.0
      %929 = vmatprep.subr.mxu0 0.0
      %930 = vmatpush1.msra.mxu0 0.0
      %931 = vmatprep.subr.mxu0 0.0
      %932 = vmatpush1.msra.mxu0 0.0
      %933 = vmatprep.subr.mxu0 0.0
      %934 = vmatpush1.msra.mxu0 0.0
      %935 = vmatprep.subr.mxu0 0.0
      %936 = vmatpush1.msra.mxu0 0.0
      %937 = vmatprep.subr.mxu0 0.0
      %938 = vmatpush1.msra.mxu0 0.0
      %939 = vmatprep.subr.mxu0 0.0
      %940 = vmatpush1.msra.mxu0 0.0
      %941 = vmatprep.subr.mxu0 0.0
      %942 = vmatpush1.msra.mxu0 0.0
      %943 = vmatprep.subr.mxu0 0.0
      %944 = vmatpush1.msra.mxu0 0.0
      %945 = vmatprep.mubr.f32.mxu0 0.0
      %946 = vmatmul.mubr.f32.gmra.mrb[0].mxu0 %v864
      %v947 = vpop.f32.mrb[0].mxu0
      %v948 = vadd.f32 0.0, %v947
      %v949 = vpop.f32.mrb[0].mxu0
      %950 = vmatprep.mubr.f32.mxu0 0.0
      %951 = vmatmul.mubr.f32.gmra.mrb[0].mxu0 %v867
      %v952 = vpop.f32.mrb[0].mxu0
      %v953 = vadd.f32 0.0, %v952
      %v954 = vpop.f32.mrb[0].mxu0
      %955 = vmatprep.mubr.f32.mxu0 0.0
      %956 = vmatmul.mubr.f32.gmra.mrb[0].mxu0 %v870
      %v957 = vpop.f32.mrb[0].mxu0
      %v958 = vadd.f32 0.0, %v957
      %v959 = vpop.f32.mrb[0].mxu0
      %960 = vmatprep.mubr.f32.mxu0 0.0
      %961 = vmatmul.mubr.f32.gmra.mrb[0].mxu0 %v873
      %v962 = vpop.f32.mrb[0].mxu0
      %v963 = vadd.f32 0.0, %v962
      %v964 = vpop.f32.mrb[0].mxu0
      %965 = vmatprep.mubr.f32.mxu0 0.0
      %966 = vmatmul.mubr.f32.gmra.mrb[0].mxu0 %v876
      %v967 = vpop.f32.mrb[0].mxu0
      %v968 = vadd.f32 0.0, %v967
      %v969 = vpop.f32.mrb[0].mxu0
      %970 = vmatprep.mubr.f32.mxu0 0.0
      %971 = vmatmul.mubr.f32.gmra.mrb[0].mxu0 %v879
      %v972 = vpop.f32.mrb[0].mxu0
      %v973 = vadd.f32 0.0, %v972
      %v974 = vpop.f32.mrb[0].mxu0
      %975 = vdwg.mxu0
      %v976 = vmul.f32 %v948, %v370
      %v977 = vmul.f32 %v953, %v376
      %v978 = vmul.f32 %v958, %v382
      %v979 = vmul.f32 %v963, %v388
      %v980 = vmul.f32 %v968, %v394
      %v981 = vmul.f32 %v973, %v400
      %v982 = vadd.f32 %v976, %v979
      %v983 = vadd.f32 %v977, %v980
      %v984 = vadd.f32 %v978, %v981
      %s985 = smul.u32 %s230, 64
      %s986 = scalar_lea.vmem %s9, %s985
      %v987 = vld [vmem:[%s986] sm:$0xff]
      %v988 = vld [vmem:[%s986 + $0x8] sm:$0xff]
      %v989 = vld [vmem:[%s986 + $0x10] sm:$0xff]
      %v990 = vld [vmem:[%s986 + $0x18] sm:$0xff]
      %v991 = vld [vmem:[%s986 + $0x20] sm:$0xff]
      %v992 = vld [vmem:[%s986 + $0x28] sm:$0xff]
      %v993 = vld [vmem:[%s986 + $0x30] sm:$0xff]
      %v994 = vld [vmem:[%s986 + $0x38] sm:$0xff]
      %v996 = vsel %vm108, %v708, 0
      %v999 = vsel %vm108, %v709, 0
      %v1002 = vsel %vm108, %v710, 0
      %v1005 = vsel %vm108, %v982, 0
      %v1008 = vsel %vm108, %v983, 0
      %v1011 = vsel %vm108, %v984, 0
      %1013 = vmatprep.subr.mxu0 0.0
      %1014 = vmatpush1.msra.mxu0 %v987
      %1015 = vmatprep.subr.mxu0 0.0
      %1016 = vmatpush1.msra.mxu0 %v988
      %1017 = vmatprep.subr.mxu0 0.0
      %1018 = vmatpush1.msra.mxu0 %v989
      %1019 = vmatprep.subr.mxu0 0.0
      %1020 = vmatpush1.msra.mxu0 %v990
      %1021 = vmatprep.subr.mxu0 0.0
      %1022 = vmatpush1.msra.mxu0 %v991
      %1023 = vmatprep.subr.mxu0 0.0
      %1024 = vmatpush1.msra.mxu0 %v992
      %1025 = vmatprep.subr.mxu0 0.0
      %1026 = vmatpush1.msra.mxu0 %v993
      %1027 = vmatprep.subr.mxu0 0.0
      %1028 = vmatpush1.msra.mxu0 %v994
      %1029 = vmatprep.subr.mxu0 0.0
      %1030 = vmatpush1.msra.mxu0 0.0
      %1031 = vmatprep.subr.mxu0 0.0
      %1032 = vmatpush1.msra.mxu0 0.0
      %1033 = vmatprep.subr.mxu0 0.0
      %1034 = vmatpush1.msra.mxu0 0.0
      %1035 = vmatprep.subr.mxu0 0.0
      %1036 = vmatpush1.msra.mxu0 0.0
      %1037 = vmatprep.subr.mxu0 0.0
      %1038 = vmatpush1.msra.mxu0 0.0
      %1039 = vmatprep.subr.mxu0 0.0
      %1040 = vmatpush1.msra.mxu0 0.0
      %1041 = vmatprep.subr.mxu0 0.0
      %1042 = vmatpush1.msra.mxu0 0.0
      %1043 = vmatprep.subr.mxu0 0.0
      %1044 = vmatpush1.msra.mxu0 0.0
      %1045 = vmatprep.subr.mxu0 0.0
      %1046 = vmatpush1.msra.mxu0 0.0
      %1047 = vmatprep.subr.mxu0 0.0
      %1048 = vmatpush1.msra.mxu0 0.0
      %1049 = vmatprep.subr.mxu0 0.0
      %1050 = vmatpush1.msra.mxu0 0.0
      %1051 = vmatprep.subr.mxu0 0.0
      %1052 = vmatpush1.msra.mxu0 0.0
      %1053 = vmatprep.subr.mxu0 0.0
      %1054 = vmatpush1.msra.mxu0 0.0
      %1055 = vmatprep.subr.mxu0 0.0
      %1056 = vmatpush1.msra.mxu0 0.0
      %1057 = vmatprep.subr.mxu0 0.0
      %1058 = vmatpush1.msra.mxu0 0.0
      %1059 = vmatprep.subr.mxu0 0.0
      %1060 = vmatpush1.msra.mxu0 0.0
      %1061 = vmatprep.subr.mxu0 0.0
      %1062 = vmatpush1.msra.mxu0 0.0
      %1063 = vmatprep.subr.mxu0 0.0
      %1064 = vmatpush1.msra.mxu0 0.0
      %1065 = vmatprep.subr.mxu0 0.0
      %1066 = vmatpush1.msra.mxu0 0.0
      %1067 = vmatprep.subr.mxu0 0.0
      %1068 = vmatpush1.msra.mxu0 0.0
      %1069 = vmatprep.subr.mxu0 0.0
      %1070 = vmatpush1.msra.mxu0 0.0
      %1071 = vmatprep.subr.mxu0 0.0
      %1072 = vmatpush1.msra.mxu0 0.0
      %1073 = vmatprep.subr.mxu0 0.0
      %1074 = vmatpush1.msra.mxu0 0.0
      %1075 = vmatprep.subr.mxu0 0.0
      %1076 = vmatpush1.msra.mxu0 0.0
      %1077 = vmatprep.mubr.f32.mxu0 0.0
      %1078 = vmatmul.mubr.f32.gmra.mrb[0].mxu0 %v996
      %v1079 = vpop.f32.mrb[0].mxu0
      %v1080 = vadd.f32 0.0, %v1079
      %v1081 = vpop.f32.mrb[0].mxu0
      %1082 = vmatprep.mubr.f32.mxu0 0.0
      %1083 = vmatmul.mubr.f32.gmra.mrb[0].mxu0 %v999
      %v1084 = vpop.f32.mrb[0].mxu0
      %v1085 = vadd.f32 0.0, %v1084
      %v1086 = vpop.f32.mrb[0].mxu0
      %1087 = vmatprep.mubr.f32.mxu0 0.0
      %1088 = vmatmul.mubr.f32.gmra.mrb[0].mxu0 %v1002
      %v1089 = vpop.f32.mrb[0].mxu0
      %v1090 = vadd.f32 0.0, %v1089
      %v1091 = vpop.f32.mrb[0].mxu0
      %1092 = vmatprep.mubr.f32.mxu0 0.0
      %1093 = vmatmul.mubr.f32.gmra.mrb[0].mxu0 %v1005
      %v1094 = vpop.f32.mrb[0].mxu0
      %v1095 = vadd.f32 0.0, %v1094
      %v1096 = vpop.f32.mrb[0].mxu0
      %1097 = vmatprep.mubr.f32.mxu0 0.0
      %1098 = vmatmul.mubr.f32.gmra.mrb[0].mxu0 %v1008
      %v1099 = vpop.f32.mrb[0].mxu0
      %v1100 = vadd.f32 0.0, %v1099
      %v1101 = vpop.f32.mrb[0].mxu0
      %1102 = vmatprep.mubr.f32.mxu0 0.0
      %1103 = vmatmul.mubr.f32.gmra.mrb[0].mxu0 %v1011
      %v1104 = vpop.f32.mrb[0].mxu0
      %v1105 = vadd.f32 0.0, %v1104
      %v1106 = vpop.f32.mrb[0].mxu0
      %1107 = vdwg.mxu0
      %v1108 = vadd.f32 %v235, %v1080
      %v1109 = vadd.f32 %v236, %v1085
      %v1110 = vadd.f32 %v237, %v1090
      %v1111 = vadd.f32 %v238, %v1095
      %v1112 = vadd.f32 %v239, %v1100
      %v1113 = vadd.f32 %v240, %v1105
      %s1114 = scalar_lea.vmem %s10, %s230
      %v1115 = vld [vmem:[%s1114] sm:$0x1]
      %v1117 = vlaneseq
      %v1118 = vshrl.u32 %v1117, 7
      %v1119 = vsub.s32 0, %v1118
      %v1120 = vrot.slane %v1115, %v1119
      %v1122 = vadd.f32 %v1108, %v1120
      %v1123 = vadd.f32 %v1109, %v1120
      %v1124 = vadd.f32 %v1110, %v1120
      %v1125 = vadd.f32 %v1111, %v1120
      %v1126 = vadd.f32 %v1112, %v1120
      %v1127 = vadd.f32 %v1113, %v1120
      %s1128 = scalar_lea.vmem %s11, %s230
      %v1129 = vld [vmem:[%s1128] sm:$0x1]
      %s1130 = scalar_lea.vmem %s12, %s230
      %v1131 = vld [vmem:[%s1130] sm:$0x1]
      %v1132 = vsel %vm108, %v1122, 0.0
      %1133 = vadd.xlane.f32.xlu0 %v1132
      %v1134 = vpop.xlane.xlu0 %1133
      %v1135 = vsel %vm108, %v1123, 0.0
      %1136 = vadd.xlane.f32.xlu0 %v1135
      %v1137 = vpop.xlane.xlu0 %1136
      %v1138 = vsel %vm108, %v1124, 0.0
      %1139 = vadd.xlane.f32.xlu0 %v1138
      %v1140 = vpop.xlane.xlu0 %1139
      %v1141 = vsel %vm108, %v1125, 0.0
      %1142 = vadd.xlane.f32.xlu0 %v1141
      %v1143 = vpop.xlane.xlu0 %1142
      %v1144 = vsel %vm108, %v1126, 0.0
      %1145 = vadd.xlane.f32.xlu0 %v1144
      %v1146 = vpop.xlane.xlu0 %1145
      %v1147 = vsel %vm108, %v1127, 0.0
      %1148 = vadd.xlane.f32.xlu0 %v1147
      %v1149 = vpop.xlane.xlu0 %1148
      %v1150 = vrcp.pop 64.0
      %v1151 = vmul.f32 %v1134, %v1150
      %v1152 = vmul.f32 %v1137, %v1150
      %v1153 = vmul.f32 %v1140, %v1150
      %v1154 = vmul.f32 %v1143, %v1150
      %v1155 = vmul.f32 %v1146, %v1150
      %v1156 = vmul.f32 %v1149, %v1150
      %v1157 = vsub.f32 %v1122, %v1151
      %v1158 = vsub.f32 %v1123, %v1152
      %v1159 = vsub.f32 %v1124, %v1153
      %v1160 = vsub.f32 %v1125, %v1154
      %v1161 = vsub.f32 %v1126, %v1155
      %v1162 = vsub.f32 %v1127, %v1156
      %v1163 = vmul.f32 %v1157, %v1157
      %v1164 = vmul.f32 %v1158, %v1158
      %v1165 = vmul.f32 %v1159, %v1159
      %v1166 = vmul.f32 %v1160, %v1160
      %v1167 = vmul.f32 %v1161, %v1161
      %v1168 = vmul.f32 %v1162, %v1162
      %v1169 = vsel %vm108, %v1163, 0.0
      %1170 = vadd.xlane.f32.xlu0 %v1169
      %v1171 = vpop.xlane.xlu0 %1170
      %v1172 = vsel %vm108, %v1164, 0.0
      %1173 = vadd.xlane.f32.xlu0 %v1172
      %v1174 = vpop.xlane.xlu0 %1173
      %v1175 = vsel %vm108, %v1165, 0.0
      %1176 = vadd.xlane.f32.xlu0 %v1175
      %v1177 = vpop.xlane.xlu0 %1176
      %v1178 = vsel %vm108, %v1166, 0.0
      %1179 = vadd.xlane.f32.xlu0 %v1178
      %v1180 = vpop.xlane.xlu0 %1179
      %v1181 = vsel %vm108, %v1167, 0.0
      %1182 = vadd.xlane.f32.xlu0 %v1181
      %v1183 = vpop.xlane.xlu0 %1182
      %v1184 = vsel %vm108, %v1168, 0.0
      %1185 = vadd.xlane.f32.xlu0 %v1184
      %v1186 = vpop.xlane.xlu0 %1185
      %v1187 = vmul.f32 %v1171, %v1150
      %v1188 = vmul.f32 %v1174, %v1150
      %v1189 = vmul.f32 %v1177, %v1150
      %v1190 = vmul.f32 %v1180, %v1150
      %v1191 = vmul.f32 %v1183, %v1150
      %v1192 = vmul.f32 %v1186, %v1150
      %v1193 = vadd.f32 %v1187, 1e-05
      %v1194 = vadd.f32 %v1188, 1e-05
      %v1195 = vadd.f32 %v1189, 1e-05
      %v1196 = vadd.f32 %v1190, 1e-05
      %v1197 = vadd.f32 %v1191, 1e-05
      %v1198 = vadd.f32 %v1192, 1e-05
      %v1199 = vrsqrt.pop %v1193
      %v1200 = vrsqrt.pop %v1194
      %v1201 = vrsqrt.pop %v1195
      %v1202 = vrsqrt.pop %v1196
      %v1203 = vrsqrt.pop %v1197
      %v1204 = vrsqrt.pop %v1198
      %v1205 = vmul.f32 %v1157, %v1199
      %v1206 = vmul.f32 %v1158, %v1200
      %v1207 = vmul.f32 %v1159, %v1201
      %v1208 = vmul.f32 %v1160, %v1202
      %v1209 = vmul.f32 %v1161, %v1203
      %v1210 = vmul.f32 %v1162, %v1204
      %v1212 = vlaneseq
      %v1213 = vshrl.u32 %v1212, 7
      %v1214 = vsub.s32 0, %v1213
      %v1215 = vrot.slane %v1129, %v1214
      %v1217 = vmul.f32 %v1205, %v1215
      %v1218 = vmul.f32 %v1206, %v1215
      %v1219 = vmul.f32 %v1207, %v1215
      %v1220 = vmul.f32 %v1208, %v1215
      %v1221 = vmul.f32 %v1209, %v1215
      %v1222 = vmul.f32 %v1210, %v1215
      %v1224 = vlaneseq
      %v1225 = vshrl.u32 %v1224, 7
      %v1226 = vsub.s32 0, %v1225
      %v1227 = vrot.slane %v1131, %v1226
      %v1229 = vadd.f32 %v1217, %v1227
      %v1230 = vadd.f32 %v1218, %v1227
      %v1231 = vadd.f32 %v1219, %v1227
      %v1232 = vadd.f32 %v1220, %v1227
      %v1233 = vadd.f32 %v1221, %v1227
      %v1234 = vadd.f32 %v1222, %v1227
      %s1235 = smul.addr %s250, 8
      %s1236 = scalar_lea.vmem %s13, %s1235
      %v1237 = vld [vmem:[%s1236] sm:$0xff]
      %v1238 = vld [vmem:[%s1236 + $0x8] sm:$0xff]
      %v1239 = vld [vmem:[%s1236 + $0x10] sm:$0xff]
      %v1240 = vld [vmem:[%s1236 + $0x18] sm:$0xff]
      %v1241 = vld [vmem:[%s1236 + $0x20] sm:$0xff]
      %v1242 = vld [vmem:[%s1236 + $0x28] sm:$0xff]
      %v1243 = vld [vmem:[%s1236 + $0x30] sm:$0xff]
      %v1244 = vld [vmem:[%s1236 + $0x38] sm:$0xff]
      %v1245 = vld [vmem:[%s1236 + $0x40] sm:$0xff]
      %v1246 = vld [vmem:[%s1236 + $0x48] sm:$0xff]
      %v1247 = vld [vmem:[%s1236 + $0x50] sm:$0xff]
      %v1248 = vld [vmem:[%s1236 + $0x58] sm:$0xff]
      %v1249 = vld [vmem:[%s1236 + $0x60] sm:$0xff]
      %v1250 = vld [vmem:[%s1236 + $0x68] sm:$0xff]
      %v1251 = vld [vmem:[%s1236 + $0x70] sm:$0xff]
      %v1252 = vld [vmem:[%s1236 + $0x78] sm:$0xff]
      %s1253 = scalar_lea.vmem %s14, %s269
      %v1254 = vld [vmem:[%s1253] sm:$0x3]
      %v1256 = vlaneseq
      %v1257 = vshrl.u32 %v1256, 7
      %v1258 = vsub.s32 0, %v1257
      %v1259 = vrot.slane %v1254, %v1258
      %v1260 = vlaneseq
      %v1261 = vshrl.u32 %v1260, 7
      %v1262 = vsub.s32 1, %v1261
      %v1263 = vrot.slane %v1254, %v1262
      %v1267 = vsel %vm108, %v1229, 0
      %v1270 = vsel %vm108, %v1230, 0
      %v1273 = vsel %vm108, %v1231, 0
      %v1276 = vsel %vm108, %v1232, 0
      %v1279 = vsel %vm108, %v1233, 0
      %v1282 = vsel %vm108, %v1234, 0
      %1284 = vmatprep.subr.mxu0 %v1238
      %1285 = vmatpush1.msra.mxu0 %v1237
      %1286 = vmatprep.subr.mxu0 %v1240
      %1287 = vmatpush1.msra.mxu0 %v1239
      %1288 = vmatprep.subr.mxu0 %v1242
      %1289 = vmatpush1.msra.mxu0 %v1241
      %1290 = vmatprep.subr.mxu0 %v1244
      %1291 = vmatpush1.msra.mxu0 %v1243
      %1292 = vmatprep.subr.mxu0 %v1246
      %1293 = vmatpush1.msra.mxu0 %v1245
      %1294 = vmatprep.subr.mxu0 %v1248
      %1295 = vmatpush1.msra.mxu0 %v1247
      %1296 = vmatprep.subr.mxu0 %v1250
      %1297 = vmatpush1.msra.mxu0 %v1249
      %1298 = vmatprep.subr.mxu0 %v1252
      %1299 = vmatpush1.msra.mxu0 %v1251
      %1300 = vmatprep.subr.mxu0 0.0
      %1301 = vmatpush1.msra.mxu0 0.0
      %1302 = vmatprep.subr.mxu0 0.0
      %1303 = vmatpush1.msra.mxu0 0.0
      %1304 = vmatprep.subr.mxu0 0.0
      %1305 = vmatpush1.msra.mxu0 0.0
      %1306 = vmatprep.subr.mxu0 0.0
      %1307 = vmatpush1.msra.mxu0 0.0
      %1308 = vmatprep.subr.mxu0 0.0
      %1309 = vmatpush1.msra.mxu0 0.0
      %1310 = vmatprep.subr.mxu0 0.0
      %1311 = vmatpush1.msra.mxu0 0.0
      %1312 = vmatprep.subr.mxu0 0.0
      %1313 = vmatpush1.msra.mxu0 0.0
      %1314 = vmatprep.subr.mxu0 0.0
      %1315 = vmatpush1.msra.mxu0 0.0
      %1316 = vmatprep.subr.mxu0 0.0
      %1317 = vmatpush1.msra.mxu0 0.0
      %1318 = vmatprep.subr.mxu0 0.0
      %1319 = vmatpush1.msra.mxu0 0.0
      %1320 = vmatprep.subr.mxu0 0.0
      %1321 = vmatpush1.msra.mxu0 0.0
      %1322 = vmatprep.subr.mxu0 0.0
      %1323 = vmatpush1.msra.mxu0 0.0
      %1324 = vmatprep.subr.mxu0 0.0
      %1325 = vmatpush1.msra.mxu0 0.0
      %1326 = vmatprep.subr.mxu0 0.0
      %1327 = vmatpush1.msra.mxu0 0.0
      %1328 = vmatprep.subr.mxu0 0.0
      %1329 = vmatpush1.msra.mxu0 0.0
      %1330 = vmatprep.subr.mxu0 0.0
      %1331 = vmatpush1.msra.mxu0 0.0
      %1332 = vmatprep.subr.mxu0 0.0
      %1333 = vmatpush1.msra.mxu0 0.0
      %1334 = vmatprep.subr.mxu0 0.0
      %1335 = vmatpush1.msra.mxu0 0.0
      %1336 = vmatprep.subr.mxu0 0.0
      %1337 = vmatpush1.msra.mxu0 0.0
      %1338 = vmatprep.subr.mxu0 0.0
      %1339 = vmatpush1.msra.mxu0 0.0
      %1340 = vmatprep.subr.mxu0 0.0
      %1341 = vmatpush1.msra.mxu0 0.0
      %1342 = vmatprep.subr.mxu0 0.0
      %1343 = vmatpush1.msra.mxu0 0.0
      %1344 = vmatprep.subr.mxu0 0.0
      %1345 = vmatpush1.msra.mxu0 0.0
      %1346 = vmatprep.subr.mxu0 0.0
      %1347 = vmatpush1.msra.mxu0 0.0
      %1348 = vmatprep.mubr.f32.mxu0 0.0
      %1349 = vmatmul.mubr.f32.gmra.mrb[0].mxu0 %v1267
      %v1350 = vpop.f32.mrb[0].mxu0
      %v1351 = vadd.f32 %v1259, %v1350
      %v1352 = vpop.f32.mrb[0].mxu0
      %v1353 = vadd.f32 %v1263, %v1352
      %1354 = vmatprep.mubr.f32.mxu0 0.0
      %1355 = vmatmul.mubr.f32.gmra.mrb[0].mxu0 %v1270
      %v1356 = vpop.f32.mrb[0].mxu0
      %v1357 = vadd.f32 %v1259, %v1356
      %v1358 = vpop.f32.mrb[0].mxu0
      %v1359 = vadd.f32 %v1263, %v1358
      %1360 = vmatprep.mubr.f32.mxu0 0.0
      %1361 = vmatmul.mubr.f32.gmra.mrb[0].mxu0 %v1273
      %v1362 = vpop.f32.mrb[0].mxu0
      %v1363 = vadd.f32 %v1259, %v1362
      %v1364 = vpop.f32.mrb[0].mxu0
      %v1365 = vadd.f32 %v1263, %v1364
      %1366 = vmatprep.mubr.f32.mxu0 0.0
      %1367 = vmatmul.mubr.f32.gmra.mrb[0].mxu0 %v1276
      %v1368 = vpop.f32.mrb[0].mxu0
      %v1369 = vadd.f32 %v1259, %v1368
      %v1370 = vpop.f32.mrb[0].mxu0
      %v1371 = vadd.f32 %v1263, %v1370
      %1372 = vmatprep.mubr.f32.mxu0 0.0
      %1373 = vmatmul.mubr.f32.gmra.mrb[0].mxu0 %v1279
      %v1374 = vpop.f32.mrb[0].mxu0
      %v1375 = vadd.f32 %v1259, %v1374
      %v1376 = vpop.f32.mrb[0].mxu0
      %v1377 = vadd.f32 %v1263, %v1376
      %1378 = vmatprep.mubr.f32.mxu0 0.0
      %1379 = vmatmul.mubr.f32.gmra.mrb[0].mxu0 %v1282
      %v1380 = vpop.f32.mrb[0].mxu0
      %v1381 = vadd.f32 %v1259, %v1380
      %v1382 = vpop.f32.mrb[0].mxu0
      %v1383 = vadd.f32 %v1263, %v1382
      %1384 = vdwg.mxu0
      %v1385 = vmax.f32 %v1351, 0.0
      %v1386 = vmax.f32 %v1353, 0.0
      %v1387 = vmax.f32 %v1357, 0.0
      %v1388 = vmax.f32 %v1359, 0.0
      %v1389 = vmax.f32 %v1363, 0.0
      %v1390 = vmax.f32 %v1365, 0.0
      %v1391 = vmax.f32 %v1369, 0.0
      %v1392 = vmax.f32 %v1371, 0.0
      %v1393 = vmax.f32 %v1375, 0.0
      %v1394 = vmax.f32 %v1377, 0.0
      %v1395 = vmax.f32 %v1381, 0.0
      %v1396 = vmax.f32 %v1383, 0.0
      %s1397 = smul.u32 %s230, 256
      %s1398 = scalar_lea.vmem %s15, %s1397
      %v1399 = vld [vmem:[%s1398] sm:$0xff]
      %v1400 = vld [vmem:[%s1398 + $0x8] sm:$0xff]
      %v1401 = vld [vmem:[%s1398 + $0x10] sm:$0xff]
      %v1402 = vld [vmem:[%s1398 + $0x18] sm:$0xff]
      %v1403 = vld [vmem:[%s1398 + $0x20] sm:$0xff]
      %v1404 = vld [vmem:[%s1398 + $0x28] sm:$0xff]
      %v1405 = vld [vmem:[%s1398 + $0x30] sm:$0xff]
      %v1406 = vld [vmem:[%s1398 + $0x38] sm:$0xff]
      %v1407 = vld [vmem:[%s1398 + $0x40] sm:$0xff]
      %v1408 = vld [vmem:[%s1398 + $0x48] sm:$0xff]
      %v1409 = vld [vmem:[%s1398 + $0x50] sm:$0xff]
      %v1410 = vld [vmem:[%s1398 + $0x58] sm:$0xff]
      %v1411 = vld [vmem:[%s1398 + $0x60] sm:$0xff]
      %v1412 = vld [vmem:[%s1398 + $0x68] sm:$0xff]
      %v1413 = vld [vmem:[%s1398 + $0x70] sm:$0xff]
      %v1414 = vld [vmem:[%s1398 + $0x78] sm:$0xff]
      %v1415 = vld [vmem:[%s1398 + $0x80] sm:$0xff]
      %v1416 = vld [vmem:[%s1398 + $0x88] sm:$0xff]
      %v1417 = vld [vmem:[%s1398 + $0x90] sm:$0xff]
      %v1418 = vld [vmem:[%s1398 + $0x98] sm:$0xff]
      %v1419 = vld [vmem:[%s1398 + $0xa0] sm:$0xff]
      %v1420 = vld [vmem:[%s1398 + $0xa8] sm:$0xff]
      %v1421 = vld [vmem:[%s1398 + $0xb0] sm:$0xff]
      %v1422 = vld [vmem:[%s1398 + $0xb8] sm:$0xff]
      %v1423 = vld [vmem:[%s1398 + $0xc0] sm:$0xff]
      %v1424 = vld [vmem:[%s1398 + $0xc8] sm:$0xff]
      %v1425 = vld [vmem:[%s1398 + $0xd0] sm:$0xff]
      %v1426 = vld [vmem:[%s1398 + $0xd8] sm:$0xff]
      %v1427 = vld [vmem:[%s1398 + $0xe0] sm:$0xff]
      %v1428 = vld [vmem:[%s1398 + $0xe8] sm:$0xff]
      %v1429 = vld [vmem:[%s1398 + $0xf0] sm:$0xff]
      %v1430 = vld [vmem:[%s1398 + $0xf8] sm:$0xff]
      %1431 = vmatprep.subr.mxu0 0.0
      %1432 = vmatpush1.msra.mxu0 %v1399
      %1433 = vmatprep.subr.mxu0 0.0
      %1434 = vmatpush1.msra.mxu0 %v1400
      %1435 = vmatprep.subr.mxu0 0.0
      %1436 = vmatpush1.msra.mxu0 %v1401
      %1437 = vmatprep.subr.mxu0 0.0
      %1438 = vmatpush1.msra.mxu0 %v1402
      %1439 = vmatprep.subr.mxu0 0.0
      %1440 = vmatpush1.msra.mxu0 %v1403
      %1441 = vmatprep.subr.mxu0 0.0
      %1442 = vmatpush1.msra.mxu0 %v1404
      %1443 = vmatprep.subr.mxu0 0.0
      %1444 = vmatpush1.msra.mxu0 %v1405
      %1445 = vmatprep.subr.mxu0 0.0
      %1446 = vmatpush1.msra.mxu0 %v1406
      %1447 = vmatprep.subr.mxu0 0.0
      %1448 = vmatpush1.msra.mxu0 %v1407
      %1449 = vmatprep.subr.mxu0 0.0
      %1450 = vmatpush1.msra.mxu0 %v1408
      %1451 = vmatprep.subr.mxu0 0.0
      %1452 = vmatpush1.msra.mxu0 %v1409
      %1453 = vmatprep.subr.mxu0 0.0
      %1454 = vmatpush1.msra.mxu0 %v1410
      %1455 = vmatprep.subr.mxu0 0.0
      %1456 = vmatpush1.msra.mxu0 %v1411
      %1457 = vmatprep.subr.mxu0 0.0
      %1458 = vmatpush1.msra.mxu0 %v1412
      %1459 = vmatprep.subr.mxu0 0.0
      %1460 = vmatpush1.msra.mxu0 %v1413
      %1461 = vmatprep.subr.mxu0 0.0
      %1462 = vmatpush1.msra.mxu0 %v1414
      %1463 = vmatprep.subr.mxu0 0.0
      %1464 = vmatpush1.msra.mxu0 %v1415
      %1465 = vmatprep.subr.mxu0 0.0
      %1466 = vmatpush1.msra.mxu0 %v1416
      %1467 = vmatprep.subr.mxu0 0.0
      %1468 = vmatpush1.msra.mxu0 %v1417
      %1469 = vmatprep.subr.mxu0 0.0
      %1470 = vmatpush1.msra.mxu0 %v1418
      %1471 = vmatprep.subr.mxu0 0.0
      %1472 = vmatpush1.msra.mxu0 %v1419
      %1473 = vmatprep.subr.mxu0 0.0
      %1474 = vmatpush1.msra.mxu0 %v1420
      %1475 = vmatprep.subr.mxu0 0.0
      %1476 = vmatpush1.msra.mxu0 %v1421
      %1477 = vmatprep.subr.mxu0 0.0
      %1478 = vmatpush1.msra.mxu0 %v1422
      %1479 = vmatprep.subr.mxu0 0.0
      %1480 = vmatpush1.msra.mxu0 %v1423
      %1481 = vmatprep.subr.mxu0 0.0
      %1482 = vmatpush1.msra.mxu0 %v1424
      %1483 = vmatprep.subr.mxu0 0.0
      %1484 = vmatpush1.msra.mxu0 %v1425
      %1485 = vmatprep.subr.mxu0 0.0
      %1486 = vmatpush1.msra.mxu0 %v1426
      %1487 = vmatprep.subr.mxu0 0.0
      %1488 = vmatpush1.msra.mxu0 %v1427
      %1489 = vmatprep.subr.mxu0 0.0
      %1490 = vmatpush1.msra.mxu0 %v1428
      %1491 = vmatprep.subr.mxu0 0.0
      %1492 = vmatpush1.msra.mxu0 %v1429
      %1493 = vmatprep.subr.mxu0 0.0
      %1494 = vmatpush1.msra.mxu0 %v1430
      %1495 = vmatprep.mubr.f32.mxu0 %v1386
      %1496 = vmatmul.mubr.f32.gmra.mrb[0].mxu0 %v1385
      %v1497 = vpop.f32.mrb[0].mxu0
      %v1498 = vadd.f32 0.0, %v1497
      %v1499 = vpop.f32.mrb[0].mxu0
      %1500 = vmatprep.mubr.f32.mxu0 %v1388
      %1501 = vmatmul.mubr.f32.gmra.mrb[0].mxu0 %v1387
      %v1502 = vpop.f32.mrb[0].mxu0
      %v1503 = vadd.f32 0.0, %v1502
      %v1504 = vpop.f32.mrb[0].mxu0
      %1505 = vmatprep.mubr.f32.mxu0 %v1390
      %1506 = vmatmul.mubr.f32.gmra.mrb[0].mxu0 %v1389
      %v1507 = vpop.f32.mrb[0].mxu0
      %v1508 = vadd.f32 0.0, %v1507
      %v1509 = vpop.f32.mrb[0].mxu0
      %1510 = vmatprep.mubr.f32.mxu0 %v1392
      %1511 = vmatmul.mubr.f32.gmra.mrb[0].mxu0 %v1391
      %v1512 = vpop.f32.mrb[0].mxu0
      %v1513 = vadd.f32 0.0, %v1512
      %v1514 = vpop.f32.mrb[0].mxu0
      %1515 = vmatprep.mubr.f32.mxu0 %v1394
      %1516 = vmatmul.mubr.f32.gmra.mrb[0].mxu0 %v1393
      %v1517 = vpop.f32.mrb[0].mxu0
      %v1518 = vadd.f32 0.0, %v1517
      %v1519 = vpop.f32.mrb[0].mxu0
      %1520 = vmatprep.mubr.f32.mxu0 %v1396
      %1521 = vmatmul.mubr.f32.gmra.mrb[0].mxu0 %v1395
      %v1522 = vpop.f32.mrb[0].mxu0
      %v1523 = vadd.f32 0.0, %v1522
      %v1524 = vpop.f32.mrb[0].mxu0
      %1525 = vdwg.mxu0
      %v1526 = vadd.f32 %v1229, %v1498
      %v1527 = vadd.f32 %v1230, %v1503
      %v1528 = vadd.f32 %v1231, %v1508
      %v1529 = vadd.f32 %v1232, %v1513
      %v1530 = vadd.f32 %v1233, %v1518
      %v1531 = vadd.f32 %v1234, %v1523
      %s1532 = scalar_lea.vmem %s16, %s230
      %v1533 = vld [vmem:[%s1532] sm:$0x1]
      %v1535 = vlaneseq
      %v1536 = vshrl.u32 %v1535, 7
      %v1537 = vsub.s32 0, %v1536
      %v1538 = vrot.slane %v1533, %v1537
      %v1540 = vadd.f32 %v1526, %v1538
      %v1541 = vadd.f32 %v1527, %v1538
      %v1542 = vadd.f32 %v1528, %v1538
      %v1543 = vadd.f32 %v1529, %v1538
      %v1544 = vadd.f32 %v1530, %v1538
      %v1545 = vadd.f32 %v1531, %v1538
      %s1546 = scalar_lea.vmem %s17, %s230
      %v1547 = vld [vmem:[%s1546] sm:$0x1]
      %s1548 = scalar_lea.vmem %s18, %s230
      %v1549 = vld [vmem:[%s1548] sm:$0x1]
      %v1550 = vsel %vm108, %v1540, 0.0
      %1551 = vadd.xlane.f32.xlu0 %v1550
      %v1552 = vpop.xlane.xlu0 %1551
      %v1553 = vsel %vm108, %v1541, 0.0
      %1554 = vadd.xlane.f32.xlu0 %v1553
      %v1555 = vpop.xlane.xlu0 %1554
      %v1556 = vsel %vm108, %v1542, 0.0
      %1557 = vadd.xlane.f32.xlu0 %v1556
      %v1558 = vpop.xlane.xlu0 %1557
      %v1559 = vsel %vm108, %v1543, 0.0
      %1560 = vadd.xlane.f32.xlu0 %v1559
      %v1561 = vpop.xlane.xlu0 %1560
      %v1562 = vsel %vm108, %v1544, 0.0
      %1563 = vadd.xlane.f32.xlu0 %v1562
      %v1564 = vpop.xlane.xlu0 %1563
      %v1565 = vsel %vm108, %v1545, 0.0
      %1566 = vadd.xlane.f32.xlu0 %v1565
      %v1567 = vpop.xlane.xlu0 %1566
      %v1568 = vmul.f32 %v1552, %v1150
      %v1569 = vmul.f32 %v1555, %v1150
      %v1570 = vmul.f32 %v1558, %v1150
      %v1571 = vmul.f32 %v1561, %v1150
      %v1572 = vmul.f32 %v1564, %v1150
      %v1573 = vmul.f32 %v1567, %v1150
      %v1574 = vsub.f32 %v1540, %v1568
      %v1575 = vsub.f32 %v1541, %v1569
      %v1576 = vsub.f32 %v1542, %v1570
      %v1577 = vsub.f32 %v1543, %v1571
      %v1578 = vsub.f32 %v1544, %v1572
      %v1579 = vsub.f32 %v1545, %v1573
      %v1580 = vmul.f32 %v1574, %v1574
      %v1581 = vmul.f32 %v1575, %v1575
      %v1582 = vmul.f32 %v1576, %v1576
      %v1583 = vmul.f32 %v1577, %v1577
      %v1584 = vmul.f32 %v1578, %v1578
      %v1585 = vmul.f32 %v1579, %v1579
      %v1586 = vsel %vm108, %v1580, 0.0
      %1587 = vadd.xlane.f32.xlu0 %v1586
      %v1588 = vpop.xlane.xlu0 %1587
      %v1589 = vsel %vm108, %v1581, 0.0
      %1590 = vadd.xlane.f32.xlu0 %v1589
      %v1591 = vpop.xlane.xlu0 %1590
      %v1592 = vsel %vm108, %v1582, 0.0
      %1593 = vadd.xlane.f32.xlu0 %v1592
      %v1594 = vpop.xlane.xlu0 %1593
      %v1595 = vsel %vm108, %v1583, 0.0
      %1596 = vadd.xlane.f32.xlu0 %v1595
      %v1597 = vpop.xlane.xlu0 %1596
      %v1598 = vsel %vm108, %v1584, 0.0
      %1599 = vadd.xlane.f32.xlu0 %v1598
      %v1600 = vpop.xlane.xlu0 %1599
      %v1601 = vsel %vm108, %v1585, 0.0
      %1602 = vadd.xlane.f32.xlu0 %v1601
      %v1603 = vpop.xlane.xlu0 %1602
      %v1604 = vmul.f32 %v1588, %v1150
      %v1605 = vmul.f32 %v1591, %v1150
      %v1606 = vmul.f32 %v1594, %v1150
      %v1607 = vmul.f32 %v1597, %v1150
      %v1608 = vmul.f32 %v1600, %v1150
      %v1609 = vmul.f32 %v1603, %v1150
      %v1610 = vadd.f32 %v1604, 1e-05
      %v1611 = vadd.f32 %v1605, 1e-05
      %v1612 = vadd.f32 %v1606, 1e-05
      %v1613 = vadd.f32 %v1607, 1e-05
      %v1614 = vadd.f32 %v1608, 1e-05
      %v1615 = vadd.f32 %v1609, 1e-05
      %v1616 = vrsqrt.pop %v1610
      %v1617 = vrsqrt.pop %v1611
      %v1618 = vrsqrt.pop %v1612
      %v1619 = vrsqrt.pop %v1613
      %v1620 = vrsqrt.pop %v1614
      %v1621 = vrsqrt.pop %v1615
      %v1622 = vmul.f32 %v1574, %v1616
      %v1623 = vmul.f32 %v1575, %v1617
      %v1624 = vmul.f32 %v1576, %v1618
      %v1625 = vmul.f32 %v1577, %v1619
      %v1626 = vmul.f32 %v1578, %v1620
      %v1627 = vmul.f32 %v1579, %v1621
      %v1629 = vlaneseq
      %v1630 = vshrl.u32 %v1629, 7
      %v1631 = vsub.s32 0, %v1630
      %v1632 = vrot.slane %v1547, %v1631
      %v1634 = vmul.f32 %v1622, %v1632
      %v1635 = vmul.f32 %v1623, %v1632
      %v1636 = vmul.f32 %v1624, %v1632
      %v1637 = vmul.f32 %v1625, %v1632
      %v1638 = vmul.f32 %v1626, %v1632
      %v1639 = vmul.f32 %v1627, %v1632
      %v1641 = vlaneseq
      %v1642 = vshrl.u32 %v1641, 7
      %v1643 = vsub.s32 0, %v1642
      %v1644 = vrot.slane %v1549, %v1643
      %v1646 = vadd.f32 %v1634, %v1644
      %v1647 = vadd.f32 %v1635, %v1644
      %v1648 = vadd.f32 %v1636, %v1644
      %v1649 = vadd.f32 %v1637, %v1644
      %v1650 = vadd.f32 %v1638, %v1644
      %v1651 = vadd.f32 %v1639, %v1644
      %1652 = vst.msk [vmem:[#allocation2] sm:$0xff] %vm108, %v1646
      %1653 = vst.msk [vmem:[#allocation2 + $0x8] sm:$0xff] %vm108, %v1647
      %1654 = vst.msk [vmem:[#allocation2 + $0x10] sm:$0xff] %vm108, %v1648
      %1655 = vst.msk [vmem:[#allocation2 + $0x18] sm:$0xff] %vm108, %v1649
      %1656 = vst.msk [vmem:[#allocation2 + $0x20] sm:$0xff] %vm108, %v1650
      %1657 = vst.msk [vmem:[#allocation2 + $0x28] sm:$0xff] %vm108, %v1651
    $region90: #{vit_forward.1} parent=1 // loop_footer
      %s234 = sadd.s32 1, %s230
    $region91: #{vit_forward.1} parent=1 // loop_footer_branch
      %229 = sbr.rel target = $region87
    $region92: #{vit_forward.1} parent=1 // loop_exit
      _
    %v1658 = vld [vmem:[#allocation2 + $0x10] sm:$0xff]
    %v1659 = vld [vmem:[#allocation2 + $0x28] sm:$0xff]
    %v1661 = vrot.slane %v1659, 7
    %vm1663 = vcmask 1040384
    %v1664 = vsel %vm1663, %v1658, %v1661
    %v1665 = vld [vmem:[%s19] sm:$0xff]
    %v1666 = vld [vmem:[%s19 + $0x8] sm:$0xff]
    %v1667 = vld [vmem:[%s19 + $0x10] sm:$0xff]
    %v1668 = vld [vmem:[%s19 + $0x18] sm:$0xff]
    %v1669 = vld [vmem:[%s19 + $0x20] sm:$0xff]
    %v1670 = vld [vmem:[%s19 + $0x28] sm:$0xff]
    %v1671 = vld [vmem:[%s19 + $0x30] sm:$0xff]
    %v1672 = vld [vmem:[%s19 + $0x38] sm:$0xff]
    %v1673 = vld [vmem:[%s20] sm:$0x1]
    %v1675 = vlaneseq
    %v1676 = vshrl.u32 %v1675, 7
    %v1677 = vsub.s32 0, %v1676
    %v1678 = vrot.slane %v1673, %v1677
    %v1681 = vsel %vm108, %v1664, 0
    %1683 = vmatprep.subr.mxu0 0.0
    %1684 = vmatpush1.msra.mxu0 %v1665
    %1685 = vmatprep.subr.mxu0 0.0
    %1686 = vmatpush1.msra.mxu0 %v1666
    %1687 = vmatprep.subr.mxu0 0.0
    %1688 = vmatpush1.msra.mxu0 %v1667
    %1689 = vmatprep.subr.mxu0 0.0
    %1690 = vmatpush1.msra.mxu0 %v1668
    %1691 = vmatprep.subr.mxu0 0.0
    %1692 = vmatpush1.msra.mxu0 %v1669
    %1693 = vmatprep.subr.mxu0 0.0
    %1694 = vmatpush1.msra.mxu0 %v1670
    %1695 = vmatprep.subr.mxu0 0.0
    %1696 = vmatpush1.msra.mxu0 %v1671
    %1697 = vmatprep.subr.mxu0 0.0
    %1698 = vmatpush1.msra.mxu0 %v1672
    %1699 = vmatprep.subr.mxu0 0.0
    %1700 = vmatpush1.msra.mxu0 0.0
    %1701 = vmatprep.subr.mxu0 0.0
    %1702 = vmatpush1.msra.mxu0 0.0
    %1703 = vmatprep.subr.mxu0 0.0
    %1704 = vmatpush1.msra.mxu0 0.0
    %1705 = vmatprep.subr.mxu0 0.0
    %1706 = vmatpush1.msra.mxu0 0.0
    %1707 = vmatprep.subr.mxu0 0.0
    %1708 = vmatpush1.msra.mxu0 0.0
    %1709 = vmatprep.subr.mxu0 0.0
    %1710 = vmatpush1.msra.mxu0 0.0
    %1711 = vmatprep.subr.mxu0 0.0
    %1712 = vmatpush1.msra.mxu0 0.0
    %1713 = vmatprep.subr.mxu0 0.0
    %1714 = vmatpush1.msra.mxu0 0.0
    %1715 = vmatprep.subr.mxu0 0.0
    %1716 = vmatpush1.msra.mxu0 0.0
    %1717 = vmatprep.subr.mxu0 0.0
    %1718 = vmatpush1.msra.mxu0 0.0
    %1719 = vmatprep.subr.mxu0 0.0
    %1720 = vmatpush1.msra.mxu0 0.0
    %1721 = vmatprep.subr.mxu0 0.0
    %1722 = vmatpush1.msra.mxu0 0.0
    %1723 = vmatprep.subr.mxu0 0.0
    %1724 = vmatpush1.msra.mxu0 0.0
    %1725 = vmatprep.subr.mxu0 0.0
    %1726 = vmatpush1.msra.mxu0 0.0
    %1727 = vmatprep.subr.mxu0 0.0
    %1728 = vmatpush1.msra.mxu0 0.0
    %1729 = vmatprep.subr.mxu0 0.0
    %1730 = vmatpush1.msra.mxu0 0.0
    %1731 = vmatprep.subr.mxu0 0.0
    %1732 = vmatpush1.msra.mxu0 0.0
    %1733 = vmatprep.subr.mxu0 0.0
    %1734 = vmatpush1.msra.mxu0 0.0
    %1735 = vmatprep.subr.mxu0 0.0
    %1736 = vmatpush1.msra.mxu0 0.0
    %1737 = vmatprep.subr.mxu0 0.0
    %1738 = vmatpush1.msra.mxu0 0.0
    %1739 = vmatprep.subr.mxu0 0.0
    %1740 = vmatpush1.msra.mxu0 0.0
    %1741 = vmatprep.subr.mxu0 0.0
    %1742 = vmatpush1.msra.mxu0 0.0
    %1743 = vmatprep.subr.mxu0 0.0
    %1744 = vmatpush1.msra.mxu0 0.0
    %1745 = vmatprep.subr.mxu0 0.0
    %1746 = vmatpush1.msra.mxu0 0.0
    %1747 = vmatprep.mubr.f32.mxu0 0.0
    %1748 = vmatmul.mubr.f32.gmra.mrb[0].mxu0 %v1681
    %v1749 = vpop.f32.mrb[0].mxu0
    %v1750 = vadd.f32 %v1678, %v1749
    %v1751 = vpop.f32.mrb[0].mxu0
    %1752 = vdwg.mxu0
    %1753 = vst [vmem:[#allocation3] sm:$0x3] %v1750
    // Predicated region
    $region93: #{vit_forward.1} parent=1 // pred_check
      _
    $region94: #{vit_forward.1} parent=1 // pred_check_branch
      %1755 = sbr.rel (0) target = $region96
    $region95: #{vit_forward.1} parent=1 // pred_region
      %s1757 = ssub.s32 32, 32
      %1758 = vsyncadd [#allocation4], %s1757
      %s1760 = sshll.u32 [#allocation3], 4
      %s1761 = int_to_ptr.vmem [resolvable:$true] %s1760
      %1763 = dma.vmem_to_hbm [thread:$0]  %s1761, 32, %s21, [#allocation4]
    $region96: #{vit_forward.1} parent=1 // pred_fallthru
      _
    // Predicated region
    $region97: #{vit_forward.1} parent=1 // pred_check
      _
    $region98: #{vit_forward.1} parent=1 // pred_check_branch
      %1765 = sbr.rel (0) target = $region100
    $region99: #{vit_forward.1} parent=1 // pred_region
      %1766 = dma.done [#allocation4], 32
    $region100: #{vit_forward.1} parent=1 // pred_fallthru
      _
    %1767 = vsyncpa [#allocation4], 1

</llo_original>
